<compile_context>
chip_gen: v7x
topology: tpu7x:2x2x1
jax: 0.10.0
libtpu: 0.0.40
codegen_flags: <defaults>
</compile_context>

<pallas_src>
import functools

import jax
import jax.numpy as jnp
from jax.experimental import pallas as pl
from jax.experimental.pallas import tpu as pltpu


# -----------------------------------------------------------------------------
# Pallas kernel: multi-layer LSTM forward (wavefront schedule) + final Linear
# -----------------------------------------------------------------------------
def _lstm_fc_kernel(x_ref, wih0_ref, *rest, layer_num, hidden_dim, seq_len, batch_tile):
    L = layer_num
    H = hidden_dim
    T = seq_len
    BT = batch_tile

    wrow_refs = rest[:L]          # row l: (H, 8H) = [W_hh_l | W_ih_{l+1}] ; last row (H, 4H)
    fcw_ref = rest[L]             # (H, out_dim)
    out_ref = rest[L + 1]         # (BT, out_dim)

    # ---- Hoisted layer-0 input projection: one well-shaped MXU call (M = T*BT) ----
    # TODO(synk): for long sequences, chunk this projection over T (grid axis or
    # emit_pipeline) instead of holding the whole (T*BT, 4H) f32 value live.
    x = x_ref[0]                                                  # (T*BT, Din) bf16
    xw = jnp.dot(x, wih0_ref[...], preferred_element_type=jnp.float32)   # (T*BT, 4H) f32

    # Loop-invariant weight loads.
    wrows = [wrow_refs[l][...] for l in range(L)]                 # bf16

    def cell(gates, c_prev):
        # Two full-width EUP passes over all 4H lanes instead of 5 per-gate passes.
        sig = jax.nn.sigmoid(gates)                               # (BT, 4H)
        th = jnp.tanh(gates)
        i_g = sig[:, 0 * H:1 * H]
        f_g = sig[:, 1 * H:2 * H]
        g_g = th[:, 2 * H:3 * H]
        o_g = sig[:, 3 * H:4 * H]
        c_new = f_g * c_prev + i_g * g_g                          # f32 cell state
        h_new = o_g * jnp.tanh(c_new)
        return h_new, c_new

    # Flat per-layer carries (no (L,B,H) stacking / restacking).
    h = [jnp.zeros((BT, H), jnp.float32) for _ in range(L)]
    c = [jnp.zeros((BT, H), jnp.float32) for _ in range(L)]

    # ---- Wavefront schedule: at wave s, layer l is at time t = s - l. ----
    # Fully unrolled (T and L static & small).
    for s in range(T + L - 1):
        active = [l for l in range(L) if 0 <= s - l < T]

        # Which row-dots are needed this wave: dot_l feeds layer l's recurrent gates
        # (columns [:4H]) and layer (l+1)'s input gates (columns [4H:]).
        need = set()
        for l in active:
            need.add(l)
            if l >= 1:
                need.add(l - 1)

        # All dots use wave-start h values -> independent, they pipeline through the MXU.
        dots = {}
        for l in sorted(need):
            dots[l] = jnp.dot(h[l].astype(jnp.bfloat16), wrows[l],
                              preferred_element_type=jnp.float32)   # (BT, 8H) or (BT, 4H)

        # Cell updates for the active layers (4H = lane-tile-aligned slices, no concat).
        for l in active:
            if l == 0:
                gates = xw[s * BT:(s + 1) * BT] + dots[0][:, :4 * H]
            else:
                gates = dots[l - 1][:, 4 * H:8 * H] + dots[l][:, :4 * H]
            h[l], c[l] = cell(gates, c[l])
        # TODO(synk): inter-layer dropout is training-mode only; inference omits it.

    # fc on the last time step of the last layer (== lstm_out[:, -1, :]); bias added
    # in the wrapper.
    last = h[L - 1].astype(jnp.bfloat16)                          # (BT, H)
    out = jnp.dot(last, fcw_ref[...], preferred_element_type=jnp.float32)
    out_ref[...] = out.astype(out_ref.dtype)


# -----------------------------------------------------------------------------
# Wrapper
# -----------------------------------------------------------------------------
def lstm_model_forward(x, params, *, layer_num, hidden_dim):
    B, T, Din = x.shape
    H = hidden_dim
    out_dim = params["fc_w"].shape[1]
    w_rows = params["w_rows"]

    # Batch padding / tiling: fill the 8-wide sublane axis; tile big batches over a
    # "parallel" grid axis (lets Mosaic shard across v7x's 2 TensorCores).
    BT_MAX = 256
    B_pad = max(8, ((B + 7) // 8) * 8)
    if B_pad <= BT_MAX:
        BT = B_pad
    else:
        BT = BT_MAX
        B_pad = ((B_pad + BT - 1) // BT) * BT
    num_tiles = B_pad // BT

    # bf16 in the wrapper: halves HBM->VMEM DMA bytes of the only T*B-scaled input.
    x_bf = x.astype(jnp.bfloat16)
    if B_pad != B:
        x_bf = jnp.pad(x_bf, ((0, B_pad - B), (0, 0), (0, 0)))
    # Per batch-tile, time-major flatten: tile g rows are [(t=0, b0..), (t=1, b0..), ...]
    x_tiles = (x_bf.reshape(num_tiles, BT, T, Din)
                   .transpose(0, 2, 1, 3)
                   .reshape(num_tiles, T * BT, Din))

    kernel = functools.partial(_lstm_fc_kernel, layer_num=layer_num,
                               hidden_dim=H, seq_len=T, batch_tile=BT)

    weights = [params["w_ih0"], *w_rows, params["fc_w"]]

    def full_spec(a):
        nd = a.ndim
        return pl.BlockSpec(a.shape, lambda g, nd=nd: (0,) * nd)

    out2d = pl.pallas_call(
        kernel,
        out_shape=jax.ShapeDtypeStruct((B_pad, out_dim), jnp.float32),
        grid=(num_tiles,),
        in_specs=[pl.BlockSpec((1, T * BT, Din), lambda g: (g, 0, 0))]
                 + [full_spec(w) for w in weights],
        out_specs=pl.BlockSpec((BT, out_dim), lambda g: (g, 0)),
        compiler_params=pltpu.CompilerParams(
            dimension_semantics=("parallel",),
            vmem_limit_bytes=32 * 1024 * 1024),
    )(x_tiles, *weights)

    out = out2d[:B] + params["fc_b"]            # fold fc bias outside the kernel
    return out[:, None, :].astype(x.dtype)      # (B, 1, out_dim)


# -----------------------------------------------------------------------------
# Deterministic parameter initialization (mirrors LSTMModel.init_weights)
# -----------------------------------------------------------------------------
def init_params(key, input_dim, hidden_dim, layer_num, output_dim):
    H = hidden_dim
    keys = jax.random.split(key, 2 * layer_num + 2)

    def xavier_normal_T(k, fan_out, fan_in):
        # nn.init.xavier_normal_ on a (fan_out, fan_in) weight, stored transposed.
        std = (2.0 / (fan_in + fan_out)) ** 0.5
        w = jax.random.normal(k, (fan_out, fan_in), jnp.float32) * std
        return w.T                                              # (fan_in, fan_out)

    def orthogonal_T(k, rows, cols):
        # nn.init.orthogonal_ on a (rows, cols) weight (rows >= cols), transposed.
        a = jax.random.normal(k, (rows, cols), jnp.float32)
        q, r = jnp.linalg.qr(a)
        q = q * jnp.sign(jnp.diagonal(r))[None, :]
        return q.T                                              # (cols, rows)

    w_ih_T = [xavier_normal_T(keys[l], 4 * H, input_dim if l == 0 else H)
              for l in range(layer_num)]                        # (Din or H, 4H)
    w_hh_T = [orthogonal_T(keys[layer_num + l], 4 * H, H)
              for l in range(layer_num)]                        # (H, 4H)

    params = {"w_ih0": w_ih_T[0].astype(jnp.bfloat16)}

    # Wavefront "row" blocks: row l multiplies h_l and feeds
    #   columns [:4H]  -> layer-l recurrent gates      (W_hh_l)
    #   columns [4H:]  -> layer-(l+1) input gates      (W_ih_{l+1}); absent for last layer.
    w_rows = []
    for l in range(layer_num):
        if l < layer_num - 1:
            w_rows.append(jnp.concatenate([w_hh_T[l], w_ih_T[l + 1]], axis=1))  # (H, 8H)
        else:
            w_rows.append(w_hh_T[l])                                            # (H, 4H)
    params["w_rows"] = [w.astype(jnp.bfloat16) for w in w_rows]

    # LSTM biases: init_weights sets every 'bias' param to 0.0 -> omitted (exact).
    # fc: PyTorch Linear default uniform(-1/sqrt(H), 1/sqrt(H)).
    bound = 1.0 / (H ** 0.5)
    params["fc_w"] = jax.random.uniform(keys[-2], (H, output_dim), jnp.float32,
                                        minval=-bound, maxval=bound).astype(jnp.bfloat16)
    params["fc_b"] = jax.random.uniform(keys[-1], (output_dim,), jnp.float32,
                                        minval=-bound, maxval=bound)
    return params


if __name__ == "__main__":
    input_dim, hidden_dim, layer_num, output_dim = 4, 32, 2, 2
    batch, seq = 2, 8

    key = jax.random.PRNGKey(0)
    k_params, k_x = jax.random.split(key)
    params = init_params(k_params, input_dim, hidden_dim, layer_num, output_dim)
    x = jax.random.normal(k_x, (batch, seq, input_dim), jnp.float32)

    out = lstm_model_forward(x, params, layer_num=layer_num, hidden_dim=hidden_dim)
    out = jax.block_until_ready(out)
    assert out.shape == (batch, 1, output_dim), out.shape
    print("KERNEL_OK")
</pallas_src>

<mosaic_0001>
module attributes {stable_mosaic.version = 11 : i64} {
  func.func @_lstm_fc_kernel(%arg0: i32, %arg1: memref<1x64x4xbf16, #tpu.memory_space<vmem>>, %arg2: memref<4x128xbf16, #tpu.memory_space<vmem>>, %arg3: memref<32x256xbf16, #tpu.memory_space<vmem>>, %arg4: memref<32x128xbf16, #tpu.memory_space<vmem>>, %arg5: memref<32x2xbf16, #tpu.memory_space<vmem>>, %arg6: memref<8x2xf32, #tpu.memory_space<vmem>>) attributes {dimension_semantics = [#tpu.dimension_semantics<parallel>], iteration_bounds = array<i64: 1>, scalar_prefetch = 0 : i64, scratch_operands = 0 : i64, tpu.core_type = #tpu.core_type<tc>, window_params = [{transform_indices = @transform_0, window_bounds = array<i64: 1, 64, 4>}, {pipeline_mode = #tpu.pipeline_mode<synchronous>, transform_indices = @transform_1, window_bounds = array<i64: 4, 128>}, {pipeline_mode = #tpu.pipeline_mode<synchronous>, transform_indices = @transform_2, window_bounds = array<i64: 32, 256>}, {pipeline_mode = #tpu.pipeline_mode<synchronous>, transform_indices = @transform_3, window_bounds = array<i64: 32, 128>}, {pipeline_mode = #tpu.pipeline_mode<synchronous>, transform_indices = @transform_4, window_bounds = array<i64: 32, 2>}, {transform_indices = @transform_5, window_bounds = array<i64: 8, 2>}]} {
    %c0 = arith.constant 0 : index
    %c0_0 = arith.constant 0 : index
    %c0_1 = arith.constant 0 : index
    %0 = vector.load %arg1[%c0, %c0_0, %c0_1] : memref<1x64x4xbf16, #tpu.memory_space<vmem>>, vector<1x64x4xbf16>
    %1 = vector.shape_cast %0 : vector<1x64x4xbf16> to vector<64x4xbf16>
    %c0_2 = arith.constant 0 : index
    %c0_3 = arith.constant 0 : index
    %2 = vector.load %arg2[%c0_2, %c0_3] : memref<4x128xbf16, #tpu.memory_space<vmem>>, vector<4x128xbf16>
    %cst = arith.constant dense<0.000000e+00> : vector<64x128xf32>
    %3 = tpu.matmul %1, %2, %cst {dimension_numbers = #tpu.dot_dimension_numbers<[1], [0], [0], [1], [0, 0, 1, 1], [], []>} : vector<64x4xbf16>, vector<4x128xbf16>, vector<64x128xf32> -> vector<64x128xf32>
    %c0_4 = arith.constant 0 : index
    %c0_5 = arith.constant 0 : index
    %4 = vector.load %arg3[%c0_4, %c0_5] : memref<32x256xbf16, #tpu.memory_space<vmem>>, vector<32x256xbf16>
    %c0_6 = arith.constant 0 : index
    %c0_7 = arith.constant 0 : index
    %5 = vector.load %arg4[%c0_6, %c0_7] : memref<32x128xbf16, #tpu.memory_space<vmem>>, vector<32x128xbf16>
    %cst_8 = arith.constant 0.000000e+00 : f32
    %6 = vector.broadcast %cst_8 : f32 to vector<8x32xf32>
    %cst_9 = arith.constant 0.000000e+00 : f32
    %7 = vector.broadcast %cst_9 : f32 to vector<8x32xf32>
    %cst_10 = arith.constant 0.000000e+00 : f32
    %8 = vector.broadcast %cst_10 : f32 to vector<8x32xf32>
    %cst_11 = arith.constant 0.000000e+00 : f32
    %9 = vector.broadcast %cst_11 : f32 to vector<8x32xf32>
    %10 = arith.truncf %6 : vector<8x32xf32> to vector<8x32xbf16>
    %cst_12 = arith.constant dense<0.000000e+00> : vector<8x256xf32>
    %11 = tpu.matmul %10, %4, %cst_12 {dimension_numbers = #tpu.dot_dimension_numbers<[1], [0], [0], [1], [0, 0, 1, 1], [], []>} : vector<8x32xbf16>, vector<32x256xbf16>, vector<8x256xf32> -> vector<8x256xf32>
    %12 = vector.extract_strided_slice %3 {offsets = [0, 0], sizes = [8, 128], strides = [1, 1]} : vector<64x128xf32> to vector<8x128xf32>
    %13 = vector.extract_strided_slice %11 {offsets = [0, 0], sizes = [8, 128], strides = [1, 1]} : vector<8x256xf32> to vector<8x128xf32>
    %14 = arith.addf %12, %13 : vector<8x128xf32>
    %15 = arith.negf %14 : vector<8x128xf32>
    %16 = math.exp %15 : vector<8x128xf32>
    %cst_13 = arith.constant 1.000000e+00 : f32
    %17 = vector.broadcast %cst_13 : f32 to vector<8x128xf32>
    %18 = arith.addf %17, %16 : vector<8x128xf32>
    %19 = arith.divf %17, %18 : vector<8x128xf32>
    %20 = math.tanh %14 : vector<8x128xf32>
    %21 = vector.extract_strided_slice %19 {offsets = [0, 0], sizes = [8, 32], strides = [1, 1]} : vector<8x128xf32> to vector<8x32xf32>
    %22 = vector.extract_strided_slice %19 {offsets = [0, 32], sizes = [8, 32], strides = [1, 1]} : vector<8x128xf32> to vector<8x32xf32>
    %23 = vector.extract_strided_slice %20 {offsets = [0, 64], sizes = [8, 32], strides = [1, 1]} : vector<8x128xf32> to vector<8x32xf32>
    %24 = vector.extract_strided_slice %19 {offsets = [0, 96], sizes = [8, 32], strides = [1, 1]} : vector<8x128xf32> to vector<8x32xf32>
    %25 = arith.mulf %22, %8 : vector<8x32xf32>
    %26 = arith.mulf %21, %23 : vector<8x32xf32>
    %27 = arith.addf %25, %26 : vector<8x32xf32>
    %28 = math.tanh %27 : vector<8x32xf32>
    %29 = arith.mulf %24, %28 : vector<8x32xf32>
    %30 = arith.truncf %29 : vector<8x32xf32> to vector<8x32xbf16>
    %cst_14 = arith.constant dense<0.000000e+00> : vector<8x256xf32>
    %31 = tpu.matmul %30, %4, %cst_14 {dimension_numbers = #tpu.dot_dimension_numbers<[1], [0], [0], [1], [0, 0, 1, 1], [], []>} : vector<8x32xbf16>, vector<32x256xbf16>, vector<8x256xf32> -> vector<8x256xf32>
    %32 = arith.truncf %7 : vector<8x32xf32> to vector<8x32xbf16>
    %cst_15 = arith.constant dense<0.000000e+00> : vector<8x128xf32>
    %33 = tpu.matmul %32, %5, %cst_15 {dimension_numbers = #tpu.dot_dimension_numbers<[1], [0], [0], [1], [0, 0, 1, 1], [], []>} : vector<8x32xbf16>, vector<32x128xbf16>, vector<8x128xf32> -> vector<8x128xf32>
    %34 = vector.extract_strided_slice %3 {offsets = [8, 0], sizes = [8, 128], strides = [1, 1]} : vector<64x128xf32> to vector<8x128xf32>
    %35 = vector.extract_strided_slice %31 {offsets = [0, 0], sizes = [8, 128], strides = [1, 1]} : vector<8x256xf32> to vector<8x128xf32>
    %36 = arith.addf %34, %35 : vector<8x128xf32>
    %37 = arith.negf %36 : vector<8x128xf32>
    %38 = math.exp %37 : vector<8x128xf32>
    %cst_16 = arith.constant 1.000000e+00 : f32
    %39 = vector.broadcast %cst_16 : f32 to vector<8x128xf32>
    %40 = arith.addf %39, %38 : vector<8x128xf32>
    %41 = arith.divf %39, %40 : vector<8x128xf32>
    %42 = math.tanh %36 : vector<8x128xf32>
    %43 = vector.extract_strided_slice %41 {offsets = [0, 0], sizes = [8, 32], strides = [1, 1]} : vector<8x128xf32> to vector<8x32xf32>
    %44 = vector.extract_strided_slice %41 {offsets = [0, 32], sizes = [8, 32], strides = [1, 1]} : vector<8x128xf32> to vector<8x32xf32>
    %45 = vector.extract_strided_slice %42 {offsets = [0, 64], sizes = [8, 32], strides = [1, 1]} : vector<8x128xf32> to vector<8x32xf32>
    %46 = vector.extract_strided_slice %41 {offsets = [0, 96], sizes = [8, 32], strides = [1, 1]} : vector<8x128xf32> to vector<8x32xf32>
    %47 = arith.mulf %44, %27 : vector<8x32xf32>
    %48 = arith.mulf %43, %45 : vector<8x32xf32>
    %49 = arith.addf %47, %48 : vector<8x32xf32>
    %50 = math.tanh %49 : vector<8x32xf32>
    %51 = arith.mulf %46, %50 : vector<8x32xf32>
    %52 = vector.extract_strided_slice %31 {offsets = [0, 128], sizes = [8, 128], strides = [1, 1]} : vector<8x256xf32> to vector<8x128xf32>
    %53 = arith.addf %52, %33 : vector<8x128xf32>
    %54 = arith.negf %53 : vector<8x128xf32>
    %55 = math.exp %54 : vector<8x128xf32>
    %cst_17 = arith.constant 1.000000e+00 : f32
    %56 = vector.broadcast %cst_17 : f32 to vector<8x128xf32>
    %57 = arith.addf %56, %55 : vector<8x128xf32>
    %58 = arith.divf %56, %57 : vector<8x128xf32>
    %59 = math.tanh %53 : vector<8x128xf32>
    %60 = vector.extract_strided_slice %58 {offsets = [0, 0], sizes = [8, 32], strides = [1, 1]} : vector<8x128xf32> to vector<8x32xf32>
    %61 = vector.extract_strided_slice %58 {offsets = [0, 32], sizes = [8, 32], strides = [1, 1]} : vector<8x128xf32> to vector<8x32xf32>
    %62 = vector.extract_strided_slice %59 {offsets = [0, 64], sizes = [8, 32], strides = [1, 1]} : vector<8x128xf32> to vector<8x32xf32>
    %63 = vector.extract_strided_slice %58 {offsets = [0, 96], sizes = [8, 32], strides = [1, 1]} : vector<8x128xf32> to vector<8x32xf32>
    %64 = arith.mulf %61, %9 : vector<8x32xf32>
    %65 = arith.mulf %60, %62 : vector<8x32xf32>
    %66 = arith.addf %64, %65 : vector<8x32xf32>
    %67 = math.tanh %66 : vector<8x32xf32>
    %68 = arith.mulf %63, %67 : vector<8x32xf32>
    %69 = arith.truncf %51 : vector<8x32xf32> to vector<8x32xbf16>
    %cst_18 = arith.constant dense<0.000000e+00> : vector<8x256xf32>
    %70 = tpu.matmul %69, %4, %cst_18 {dimension_numbers = #tpu.dot_dimension_numbers<[1], [0], [0], [1], [0, 0, 1, 1], [], []>} : vector<8x32xbf16>, vector<32x256xbf16>, vector<8x256xf32> -> vector<8x256xf32>
    %71 = arith.truncf %68 : vector<8x32xf32> to vector<8x32xbf16>
    %cst_19 = arith.constant dense<0.000000e+00> : vector<8x128xf32>
    %72 = tpu.matmul %71, %5, %cst_19 {dimension_numbers = #tpu.dot_dimension_numbers<[1], [0], [0], [1], [0, 0, 1, 1], [], []>} : vector<8x32xbf16>, vector<32x128xbf16>, vector<8x128xf32> -> vector<8x128xf32>
    %73 = vector.extract_strided_slice %3 {offsets = [16, 0], sizes = [8, 128], strides = [1, 1]} : vector<64x128xf32> to vector<8x128xf32>
    %74 = vector.extract_strided_slice %70 {offsets = [0, 0], sizes = [8, 128], strides = [1, 1]} : vector<8x256xf32> to vector<8x128xf32>
    %75 = arith.addf %73, %74 : vector<8x128xf32>
    %76 = arith.negf %75 : vector<8x128xf32>
    %77 = math.exp %76 : vector<8x128xf32>
    %cst_20 = arith.constant 1.000000e+00 : f32
    %78 = vector.broadcast %cst_20 : f32 to vector<8x128xf32>
    %79 = arith.addf %78, %77 : vector<8x128xf32>
    %80 = arith.divf %78, %79 : vector<8x128xf32>
    %81 = math.tanh %75 : vector<8x128xf32>
    %82 = vector.extract_strided_slice %80 {offsets = [0, 0], sizes = [8, 32], strides = [1, 1]} : vector<8x128xf32> to vector<8x32xf32>
    %83 = vector.extract_strided_slice %80 {offsets = [0, 32], sizes = [8, 32], strides = [1, 1]} : vector<8x128xf32> to vector<8x32xf32>
    %84 = vector.extract_strided_slice %81 {offsets = [0, 64], sizes = [8, 32], strides = [1, 1]} : vector<8x128xf32> to vector<8x32xf32>
    %85 = vector.extract_strided_slice %80 {offsets = [0, 96], sizes = [8, 32], strides = [1, 1]} : vector<8x128xf32> to vector<8x32xf32>
    %86 = arith.mulf %83, %49 : vector<8x32xf32>
    %87 = arith.mulf %82, %84 : vector<8x32xf32>
    %88 = arith.addf %86, %87 : vector<8x32xf32>
    %89 = math.tanh %88 : vector<8x32xf32>
    %90 = arith.mulf %85, %89 : vector<8x32xf32>
    %91 = vector.extract_strided_slice %70 {offsets = [0, 128], sizes = [8, 128], strides = [1, 1]} : vector<8x256xf32> to vector<8x128xf32>
    %92 = arith.addf %91, %72 : vector<8x128xf32>
    %93 = arith.negf %92 : vector<8x128xf32>
    %94 = math.exp %93 : vector<8x128xf32>
    %cst_21 = arith.constant 1.000000e+00 : f32
    %95 = vector.broadcast %cst_21 : f32 to vector<8x128xf32>
    %96 = arith.addf %95, %94 : vector<8x128xf32>
    %97 = arith.divf %95, %96 : vector<8x128xf32>
    %98 = math.tanh %92 : vector<8x128xf32>
    %99 = vector.extract_strided_slice %97 {offsets = [0, 0], sizes = [8, 32], strides = [1, 1]} : vector<8x128xf32> to vector<8x32xf32>
    %100 = vector.extract_strided_slice %97 {offsets = [0, 32], sizes = [8, 32], strides = [1, 1]} : vector<8x128xf32> to vector<8x32xf32>
    %101 = vector.extract_strided_slice %98 {offsets = [0, 64], sizes = [8, 32], strides = [1, 1]} : vector<8x128xf32> to vector<8x32xf32>
    %102 = vector.extract_strided_slice %97 {offsets = [0, 96], sizes = [8, 32], strides = [1, 1]} : vector<8x128xf32> to vector<8x32xf32>
    %103 = arith.mulf %100, %66 : vector<8x32xf32>
    %104 = arith.mulf %99, %101 : vector<8x32xf32>
    %105 = arith.addf %103, %104 : vector<8x32xf32>
    %106 = math.tanh %105 : vector<8x32xf32>
    %107 = arith.mulf %102, %106 : vector<8x32xf32>
    %108 = arith.truncf %90 : vector<8x32xf32> to vector<8x32xbf16>
    %cst_22 = arith.constant dense<0.000000e+00> : vector<8x256xf32>
    %109 = tpu.matmul %108, %4, %cst_22 {dimension_numbers = #tpu.dot_dimension_numbers<[1], [0], [0], [1], [0, 0, 1, 1], [], []>} : vector<8x32xbf16>, vector<32x256xbf16>, vector<8x256xf32> -> vector<8x256xf32>
    %110 = arith.truncf %107 : vector<8x32xf32> to vector<8x32xbf16>
    %cst_23 = arith.constant dense<0.000000e+00> : vector<8x128xf32>
    %111 = tpu.matmul %110, %5, %cst_23 {dimension_numbers = #tpu.dot_dimension_numbers<[1], [0], [0], [1], [0, 0, 1, 1], [], []>} : vector<8x32xbf16>, vector<32x128xbf16>, vector<8x128xf32> -> vector<8x128xf32>
    %112 = vector.extract_strided_slice %3 {offsets = [24, 0], sizes = [8, 128], strides = [1, 1]} : vector<64x128xf32> to vector<8x128xf32>
    %113 = vector.extract_strided_slice %109 {offsets = [0, 0], sizes = [8, 128], strides = [1, 1]} : vector<8x256xf32> to vector<8x128xf32>
    %114 = arith.addf %112, %113 : vector<8x128xf32>
    %115 = arith.negf %114 : vector<8x128xf32>
    %116 = math.exp %115 : vector<8x128xf32>
    %cst_24 = arith.constant 1.000000e+00 : f32
    %117 = vector.broadcast %cst_24 : f32 to vector<8x128xf32>
    %118 = arith.addf %117, %116 : vector<8x128xf32>
    %119 = arith.divf %117, %118 : vector<8x128xf32>
    %120 = math.tanh %114 : vector<8x128xf32>
    %121 = vector.extract_strided_slice %119 {offsets = [0, 0], sizes = [8, 32], strides = [1, 1]} : vector<8x128xf32> to vector<8x32xf32>
    %122 = vector.extract_strided_slice %119 {offsets = [0, 32], sizes = [8, 32], strides = [1, 1]} : vector<8x128xf32> to vector<8x32xf32>
    %123 = vector.extract_strided_slice %120 {offsets = [0, 64], sizes = [8, 32], strides = [1, 1]} : vector<8x128xf32> to vector<8x32xf32>
    %124 = vector.extract_strided_slice %119 {offsets = [0, 96], sizes = [8, 32], strides = [1, 1]} : vector<8x128xf32> to vector<8x32xf32>
    %125 = arith.mulf %122, %88 : vector<8x32xf32>
    %126 = arith.mulf %121, %123 : vector<8x32xf32>
    %127 = arith.addf %125, %126 : vector<8x32xf32>
    %128 = math.tanh %127 : vector<8x32xf32>
    %129 = arith.mulf %124, %128 : vector<8x32xf32>
    %130 = vector.extract_strided_slice %109 {offsets = [0, 128], sizes = [8, 128], strides = [1, 1]} : vector<8x256xf32> to vector<8x128xf32>
    %131 = arith.addf %130, %111 : vector<8x128xf32>
    %132 = arith.negf %131 : vector<8x128xf32>
    %133 = math.exp %132 : vector<8x128xf32>
    %cst_25 = arith.constant 1.000000e+00 : f32
    %134 = vector.broadcast %cst_25 : f32 to vector<8x128xf32>
    %135 = arith.addf %134, %133 : vector<8x128xf32>
    %136 = arith.divf %134, %135 : vector<8x128xf32>
    %137 = math.tanh %131 : vector<8x128xf32>
    %138 = vector.extract_strided_slice %136 {offsets = [0, 0], sizes = [8, 32], strides = [1, 1]} : vector<8x128xf32> to vector<8x32xf32>
    %139 = vector.extract_strided_slice %136 {offsets = [0, 32], sizes = [8, 32], strides = [1, 1]} : vector<8x128xf32> to vector<8x32xf32>
    %140 = vector.extract_strided_slice %137 {offsets = [0, 64], sizes = [8, 32], strides = [1, 1]} : vector<8x128xf32> to vector<8x32xf32>
    %141 = vector.extract_strided_slice %136 {offsets = [0, 96], sizes = [8, 32], strides = [1, 1]} : vector<8x128xf32> to vector<8x32xf32>
    %142 = arith.mulf %139, %105 : vector<8x32xf32>
    %143 = arith.mulf %138, %140 : vector<8x32xf32>
    %144 = arith.addf %142, %143 : vector<8x32xf32>
    %145 = math.tanh %144 : vector<8x32xf32>
    %146 = arith.mulf %141, %145 : vector<8x32xf32>
    %147 = arith.truncf %129 : vector<8x32xf32> to vector<8x32xbf16>
    %cst_26 = arith.constant dense<0.000000e+00> : vector<8x256xf32>
    %148 = tpu.matmul %147, %4, %cst_26 {dimension_numbers = #tpu.dot_dimension_numbers<[1], [0], [0], [1], [0, 0, 1, 1], [], []>} : vector<8x32xbf16>, vector<32x256xbf16>, vector<8x256xf32> -> vector<8x256xf32>
    %149 = arith.truncf %146 : vector<8x32xf32> to vector<8x32xbf16>
    %cst_27 = arith.constant dense<0.000000e+00> : vector<8x128xf32>
    %150 = tpu.matmul %149, %5, %cst_27 {dimension_numbers = #tpu.dot_dimension_numbers<[1], [0], [0], [1], [0, 0, 1, 1], [], []>} : vector<8x32xbf16>, vector<32x128xbf16>, vector<8x128xf32> -> vector<8x128xf32>
    %151 = vector.extract_strided_slice %3 {offsets = [32, 0], sizes = [8, 128], strides = [1, 1]} : vector<64x128xf32> to vector<8x128xf32>
    %152 = vector.extract_strided_slice %148 {offsets = [0, 0], sizes = [8, 128], strides = [1, 1]} : vector<8x256xf32> to vector<8x128xf32>
    %153 = arith.addf %151, %152 : vector<8x128xf32>
    %154 = arith.negf %153 : vector<8x128xf32>
    %155 = math.exp %154 : vector<8x128xf32>
    %cst_28 = arith.constant 1.000000e+00 : f32
    %156 = vector.broadcast %cst_28 : f32 to vector<8x128xf32>
    %157 = arith.addf %156, %155 : vector<8x128xf32>
    %158 = arith.divf %156, %157 : vector<8x128xf32>
    %159 = math.tanh %153 : vector<8x128xf32>
    %160 = vector.extract_strided_slice %158 {offsets = [0, 0], sizes = [8, 32], strides = [1, 1]} : vector<8x128xf32> to vector<8x32xf32>
    %161 = vector.extract_strided_slice %158 {offsets = [0, 32], sizes = [8, 32], strides = [1, 1]} : vector<8x128xf32> to vector<8x32xf32>
    %162 = vector.extract_strided_slice %159 {offsets = [0, 64], sizes = [8, 32], strides = [1, 1]} : vector<8x128xf32> to vector<8x32xf32>
    %163 = vector.extract_strided_slice %158 {offsets = [0, 96], sizes = [8, 32], strides = [1, 1]} : vector<8x128xf32> to vector<8x32xf32>
    %164 = arith.mulf %161, %127 : vector<8x32xf32>
    %165 = arith.mulf %160, %162 : vector<8x32xf32>
    %166 = arith.addf %164, %165 : vector<8x32xf32>
    %167 = math.tanh %166 : vector<8x32xf32>
    %168 = arith.mulf %163, %167 : vector<8x32xf32>
    %169 = vector.extract_strided_slice %148 {offsets = [0, 128], sizes = [8, 128], strides = [1, 1]} : vector<8x256xf32> to vector<8x128xf32>
    %170 = arith.addf %169, %150 : vector<8x128xf32>
    %171 = arith.negf %170 : vector<8x128xf32>
    %172 = math.exp %171 : vector<8x128xf32>
    %cst_29 = arith.constant 1.000000e+00 : f32
    %173 = vector.broadcast %cst_29 : f32 to vector<8x128xf32>
    %174 = arith.addf %173, %172 : vector<8x128xf32>
    %175 = arith.divf %173, %174 : vector<8x128xf32>
    %176 = math.tanh %170 : vector<8x128xf32>
    %177 = vector.extract_strided_slice %175 {offsets = [0, 0], sizes = [8, 32], strides = [1, 1]} : vector<8x128xf32> to vector<8x32xf32>
    %178 = vector.extract_strided_slice %175 {offsets = [0, 32], sizes = [8, 32], strides = [1, 1]} : vector<8x128xf32> to vector<8x32xf32>
    %179 = vector.extract_strided_slice %176 {offsets = [0, 64], sizes = [8, 32], strides = [1, 1]} : vector<8x128xf32> to vector<8x32xf32>
    %180 = vector.extract_strided_slice %175 {offsets = [0, 96], sizes = [8, 32], strides = [1, 1]} : vector<8x128xf32> to vector<8x32xf32>
    %181 = arith.mulf %178, %144 : vector<8x32xf32>
    %182 = arith.mulf %177, %179 : vector<8x32xf32>
    %183 = arith.addf %181, %182 : vector<8x32xf32>
    %184 = math.tanh %183 : vector<8x32xf32>
    %185 = arith.mulf %180, %184 : vector<8x32xf32>
    %186 = arith.truncf %168 : vector<8x32xf32> to vector<8x32xbf16>
    %cst_30 = arith.constant dense<0.000000e+00> : vector<8x256xf32>
    %187 = tpu.matmul %186, %4, %cst_30 {dimension_numbers = #tpu.dot_dimension_numbers<[1], [0], [0], [1], [0, 0, 1, 1], [], []>} : vector<8x32xbf16>, vector<32x256xbf16>, vector<8x256xf32> -> vector<8x256xf32>
    %188 = arith.truncf %185 : vector<8x32xf32> to vector<8x32xbf16>
    %cst_31 = arith.constant dense<0.000000e+00> : vector<8x128xf32>
    %189 = tpu.matmul %188, %5, %cst_31 {dimension_numbers = #tpu.dot_dimension_numbers<[1], [0], [0], [1], [0, 0, 1, 1], [], []>} : vector<8x32xbf16>, vector<32x128xbf16>, vector<8x128xf32> -> vector<8x128xf32>
    %190 = vector.extract_strided_slice %3 {offsets = [40, 0], sizes = [8, 128], strides = [1, 1]} : vector<64x128xf32> to vector<8x128xf32>
    %191 = vector.extract_strided_slice %187 {offsets = [0, 0], sizes = [8, 128], strides = [1, 1]} : vector<8x256xf32> to vector<8x128xf32>
    %192 = arith.addf %190, %191 : vector<8x128xf32>
    %193 = arith.negf %192 : vector<8x128xf32>
    %194 = math.exp %193 : vector<8x128xf32>
    %cst_32 = arith.constant 1.000000e+00 : f32
    %195 = vector.broadcast %cst_32 : f32 to vector<8x128xf32>
    %196 = arith.addf %195, %194 : vector<8x128xf32>
    %197 = arith.divf %195, %196 : vector<8x128xf32>
    %198 = math.tanh %192 : vector<8x128xf32>
    %199 = vector.extract_strided_slice %197 {offsets = [0, 0], sizes = [8, 32], strides = [1, 1]} : vector<8x128xf32> to vector<8x32xf32>
    %200 = vector.extract_strided_slice %197 {offsets = [0, 32], sizes = [8, 32], strides = [1, 1]} : vector<8x128xf32> to vector<8x32xf32>
    %201 = vector.extract_strided_slice %198 {offsets = [0, 64], sizes = [8, 32], strides = [1, 1]} : vector<8x128xf32> to vector<8x32xf32>
    %202 = vector.extract_strided_slice %197 {offsets = [0, 96], sizes = [8, 32], strides = [1, 1]} : vector<8x128xf32> to vector<8x32xf32>
    %203 = arith.mulf %200, %166 : vector<8x32xf32>
    %204 = arith.mulf %199, %201 : vector<8x32xf32>
    %205 = arith.addf %203, %204 : vector<8x32xf32>
    %206 = math.tanh %205 : vector<8x32xf32>
    %207 = arith.mulf %202, %206 : vector<8x32xf32>
    %208 = vector.extract_strided_slice %187 {offsets = [0, 128], sizes = [8, 128], strides = [1, 1]} : vector<8x256xf32> to vector<8x128xf32>
    %209 = arith.addf %208, %189 : vector<8x128xf32>
    %210 = arith.negf %209 : vector<8x128xf32>
    %211 = math.exp %210 : vector<8x128xf32>
    %cst_33 = arith.constant 1.000000e+00 : f32
    %212 = vector.broadcast %cst_33 : f32 to vector<8x128xf32>
    %213 = arith.addf %212, %211 : vector<8x128xf32>
    %214 = arith.divf %212, %213 : vector<8x128xf32>
    %215 = math.tanh %209 : vector<8x128xf32>
    %216 = vector.extract_strided_slice %214 {offsets = [0, 0], sizes = [8, 32], strides = [1, 1]} : vector<8x128xf32> to vector<8x32xf32>
    %217 = vector.extract_strided_slice %214 {offsets = [0, 32], sizes = [8, 32], strides = [1, 1]} : vector<8x128xf32> to vector<8x32xf32>
    %218 = vector.extract_strided_slice %215 {offsets = [0, 64], sizes = [8, 32], strides = [1, 1]} : vector<8x128xf32> to vector<8x32xf32>
    %219 = vector.extract_strided_slice %214 {offsets = [0, 96], sizes = [8, 32], strides = [1, 1]} : vector<8x128xf32> to vector<8x32xf32>
    %220 = arith.mulf %217, %183 : vector<8x32xf32>
    %221 = arith.mulf %216, %218 : vector<8x32xf32>
    %222 = arith.addf %220, %221 : vector<8x32xf32>
    %223 = math.tanh %222 : vector<8x32xf32>
    %224 = arith.mulf %219, %223 : vector<8x32xf32>
    %225 = arith.truncf %207 : vector<8x32xf32> to vector<8x32xbf16>
    %cst_34 = arith.constant dense<0.000000e+00> : vector<8x256xf32>
    %226 = tpu.matmul %225, %4, %cst_34 {dimension_numbers = #tpu.dot_dimension_numbers<[1], [0], [0], [1], [0, 0, 1, 1], [], []>} : vector<8x32xbf16>, vector<32x256xbf16>, vector<8x256xf32> -> vector<8x256xf32>
    %227 = arith.truncf %224 : vector<8x32xf32> to vector<8x32xbf16>
    %cst_35 = arith.constant dense<0.000000e+00> : vector<8x128xf32>
    %228 = tpu.matmul %227, %5, %cst_35 {dimension_numbers = #tpu.dot_dimension_numbers<[1], [0], [0], [1], [0, 0, 1, 1], [], []>} : vector<8x32xbf16>, vector<32x128xbf16>, vector<8x128xf32> -> vector<8x128xf32>
    %229 = vector.extract_strided_slice %3 {offsets = [48, 0], sizes = [8, 128], strides = [1, 1]} : vector<64x128xf32> to vector<8x128xf32>
    %230 = vector.extract_strided_slice %226 {offsets = [0, 0], sizes = [8, 128], strides = [1, 1]} : vector<8x256xf32> to vector<8x128xf32>
    %231 = arith.addf %229, %230 : vector<8x128xf32>
    %232 = arith.negf %231 : vector<8x128xf32>
    %233 = math.exp %232 : vector<8x128xf32>
    %cst_36 = arith.constant 1.000000e+00 : f32
    %234 = vector.broadcast %cst_36 : f32 to vector<8x128xf32>
    %235 = arith.addf %234, %233 : vector<8x128xf32>
    %236 = arith.divf %234, %235 : vector<8x128xf32>
    %237 = math.tanh %231 : vector<8x128xf32>
    %238 = vector.extract_strided_slice %236 {offsets = [0, 0], sizes = [8, 32], strides = [1, 1]} : vector<8x128xf32> to vector<8x32xf32>
    %239 = vector.extract_strided_slice %236 {offsets = [0, 32], sizes = [8, 32], strides = [1, 1]} : vector<8x128xf32> to vector<8x32xf32>
    %240 = vector.extract_strided_slice %237 {offsets = [0, 64], sizes = [8, 32], strides = [1, 1]} : vector<8x128xf32> to vector<8x32xf32>
    %241 = vector.extract_strided_slice %236 {offsets = [0, 96], sizes = [8, 32], strides = [1, 1]} : vector<8x128xf32> to vector<8x32xf32>
    %242 = arith.mulf %239, %205 : vector<8x32xf32>
    %243 = arith.mulf %238, %240 : vector<8x32xf32>
    %244 = arith.addf %242, %243 : vector<8x32xf32>
    %245 = math.tanh %244 : vector<8x32xf32>
    %246 = arith.mulf %241, %245 : vector<8x32xf32>
    %247 = vector.extract_strided_slice %226 {offsets = [0, 128], sizes = [8, 128], strides = [1, 1]} : vector<8x256xf32> to vector<8x128xf32>
    %248 = arith.addf %247, %228 : vector<8x128xf32>
    %249 = arith.negf %248 : vector<8x128xf32>
    %250 = math.exp %249 : vector<8x128xf32>
    %cst_37 = arith.constant 1.000000e+00 : f32
    %251 = vector.broadcast %cst_37 : f32 to vector<8x128xf32>
    %252 = arith.addf %251, %250 : vector<8x128xf32>
    %253 = arith.divf %251, %252 : vector<8x128xf32>
    %254 = math.tanh %248 : vector<8x128xf32>
    %255 = vector.extract_strided_slice %253 {offsets = [0, 0], sizes = [8, 32], strides = [1, 1]} : vector<8x128xf32> to vector<8x32xf32>
    %256 = vector.extract_strided_slice %253 {offsets = [0, 32], sizes = [8, 32], strides = [1, 1]} : vector<8x128xf32> to vector<8x32xf32>
    %257 = vector.extract_strided_slice %254 {offsets = [0, 64], sizes = [8, 32], strides = [1, 1]} : vector<8x128xf32> to vector<8x32xf32>
    %258 = vector.extract_strided_slice %253 {offsets = [0, 96], sizes = [8, 32], strides = [1, 1]} : vector<8x128xf32> to vector<8x32xf32>
    %259 = arith.mulf %256, %222 : vector<8x32xf32>
    %260 = arith.mulf %255, %257 : vector<8x32xf32>
    %261 = arith.addf %259, %260 : vector<8x32xf32>
    %262 = math.tanh %261 : vector<8x32xf32>
    %263 = arith.mulf %258, %262 : vector<8x32xf32>
    %264 = arith.truncf %246 : vector<8x32xf32> to vector<8x32xbf16>
    %cst_38 = arith.constant dense<0.000000e+00> : vector<8x256xf32>
    %265 = tpu.matmul %264, %4, %cst_38 {dimension_numbers = #tpu.dot_dimension_numbers<[1], [0], [0], [1], [0, 0, 1, 1], [], []>} : vector<8x32xbf16>, vector<32x256xbf16>, vector<8x256xf32> -> vector<8x256xf32>
    %266 = arith.truncf %263 : vector<8x32xf32> to vector<8x32xbf16>
    %cst_39 = arith.constant dense<0.000000e+00> : vector<8x128xf32>
    %267 = tpu.matmul %266, %5, %cst_39 {dimension_numbers = #tpu.dot_dimension_numbers<[1], [0], [0], [1], [0, 0, 1, 1], [], []>} : vector<8x32xbf16>, vector<32x128xbf16>, vector<8x128xf32> -> vector<8x128xf32>
    %268 = vector.extract_strided_slice %3 {offsets = [56, 0], sizes = [8, 128], strides = [1, 1]} : vector<64x128xf32> to vector<8x128xf32>
    %269 = vector.extract_strided_slice %265 {offsets = [0, 0], sizes = [8, 128], strides = [1, 1]} : vector<8x256xf32> to vector<8x128xf32>
    %270 = arith.addf %268, %269 : vector<8x128xf32>
    %271 = arith.negf %270 : vector<8x128xf32>
    %272 = math.exp %271 : vector<8x128xf32>
    %cst_40 = arith.constant 1.000000e+00 : f32
    %273 = vector.broadcast %cst_40 : f32 to vector<8x128xf32>
    %274 = arith.addf %273, %272 : vector<8x128xf32>
    %275 = arith.divf %273, %274 : vector<8x128xf32>
    %276 = math.tanh %270 : vector<8x128xf32>
    %277 = vector.extract_strided_slice %275 {offsets = [0, 0], sizes = [8, 32], strides = [1, 1]} : vector<8x128xf32> to vector<8x32xf32>
    %278 = vector.extract_strided_slice %275 {offsets = [0, 32], sizes = [8, 32], strides = [1, 1]} : vector<8x128xf32> to vector<8x32xf32>
    %279 = vector.extract_strided_slice %276 {offsets = [0, 64], sizes = [8, 32], strides = [1, 1]} : vector<8x128xf32> to vector<8x32xf32>
    %280 = vector.extract_strided_slice %275 {offsets = [0, 96], sizes = [8, 32], strides = [1, 1]} : vector<8x128xf32> to vector<8x32xf32>
    %281 = arith.mulf %278, %244 : vector<8x32xf32>
    %282 = arith.mulf %277, %279 : vector<8x32xf32>
    %283 = arith.addf %281, %282 : vector<8x32xf32>
    %284 = math.tanh %283 : vector<8x32xf32>
    %285 = arith.mulf %280, %284 : vector<8x32xf32>
    %286 = vector.extract_strided_slice %265 {offsets = [0, 128], sizes = [8, 128], strides = [1, 1]} : vector<8x256xf32> to vector<8x128xf32>
    %287 = arith.addf %286, %267 : vector<8x128xf32>
    %288 = arith.negf %287 : vector<8x128xf32>
    %289 = math.exp %288 : vector<8x128xf32>
    %cst_41 = arith.constant 1.000000e+00 : f32
    %290 = vector.broadcast %cst_41 : f32 to vector<8x128xf32>
    %291 = arith.addf %290, %289 : vector<8x128xf32>
    %292 = arith.divf %290, %291 : vector<8x128xf32>
    %293 = math.tanh %287 : vector<8x128xf32>
    %294 = vector.extract_strided_slice %292 {offsets = [0, 0], sizes = [8, 32], strides = [1, 1]} : vector<8x128xf32> to vector<8x32xf32>
    %295 = vector.extract_strided_slice %292 {offsets = [0, 32], sizes = [8, 32], strides = [1, 1]} : vector<8x128xf32> to vector<8x32xf32>
    %296 = vector.extract_strided_slice %293 {offsets = [0, 64], sizes = [8, 32], strides = [1, 1]} : vector<8x128xf32> to vector<8x32xf32>
    %297 = vector.extract_strided_slice %292 {offsets = [0, 96], sizes = [8, 32], strides = [1, 1]} : vector<8x128xf32> to vector<8x32xf32>
    %298 = arith.mulf %295, %261 : vector<8x32xf32>
    %299 = arith.mulf %294, %296 : vector<8x32xf32>
    %300 = arith.addf %298, %299 : vector<8x32xf32>
    %301 = math.tanh %300 : vector<8x32xf32>
    %302 = arith.mulf %297, %301 : vector<8x32xf32>
    %303 = arith.truncf %285 : vector<8x32xf32> to vector<8x32xbf16>
    %cst_42 = arith.constant dense<0.000000e+00> : vector<8x256xf32>
    %304 = tpu.matmul %303, %4, %cst_42 {dimension_numbers = #tpu.dot_dimension_numbers<[1], [0], [0], [1], [0, 0, 1, 1], [], []>} : vector<8x32xbf16>, vector<32x256xbf16>, vector<8x256xf32> -> vector<8x256xf32>
    %305 = arith.truncf %302 : vector<8x32xf32> to vector<8x32xbf16>
    %cst_43 = arith.constant dense<0.000000e+00> : vector<8x128xf32>
    %306 = tpu.matmul %305, %5, %cst_43 {dimension_numbers = #tpu.dot_dimension_numbers<[1], [0], [0], [1], [0, 0, 1, 1], [], []>} : vector<8x32xbf16>, vector<32x128xbf16>, vector<8x128xf32> -> vector<8x128xf32>
    %307 = vector.extract_strided_slice %304 {offsets = [0, 128], sizes = [8, 128], strides = [1, 1]} : vector<8x256xf32> to vector<8x128xf32>
    %308 = arith.addf %307, %306 : vector<8x128xf32>
    %309 = arith.negf %308 : vector<8x128xf32>
    %310 = math.exp %309 : vector<8x128xf32>
    %cst_44 = arith.constant 1.000000e+00 : f32
    %311 = vector.broadcast %cst_44 : f32 to vector<8x128xf32>
    %312 = arith.addf %311, %310 : vector<8x128xf32>
    %313 = arith.divf %311, %312 : vector<8x128xf32>
    %314 = math.tanh %308 : vector<8x128xf32>
    %315 = vector.extract_strided_slice %313 {offsets = [0, 0], sizes = [8, 32], strides = [1, 1]} : vector<8x128xf32> to vector<8x32xf32>
    %316 = vector.extract_strided_slice %313 {offsets = [0, 32], sizes = [8, 32], strides = [1, 1]} : vector<8x128xf32> to vector<8x32xf32>
    %317 = vector.extract_strided_slice %314 {offsets = [0, 64], sizes = [8, 32], strides = [1, 1]} : vector<8x128xf32> to vector<8x32xf32>
    %318 = vector.extract_strided_slice %313 {offsets = [0, 96], sizes = [8, 32], strides = [1, 1]} : vector<8x128xf32> to vector<8x32xf32>
    %319 = arith.mulf %316, %300 : vector<8x32xf32>
    %320 = arith.mulf %315, %317 : vector<8x32xf32>
    %321 = arith.addf %319, %320 : vector<8x32xf32>
    %322 = math.tanh %321 : vector<8x32xf32>
    %323 = arith.mulf %318, %322 : vector<8x32xf32>
    %324 = arith.truncf %323 : vector<8x32xf32> to vector<8x32xbf16>
    %c0_45 = arith.constant 0 : index
    %c0_46 = arith.constant 0 : index
    %325 = vector.load %arg5[%c0_45, %c0_46] : memref<32x2xbf16, #tpu.memory_space<vmem>>, vector<32x2xbf16>
    %cst_47 = arith.constant dense<0.000000e+00> : vector<8x2xf32>
    %326 = tpu.matmul %324, %325, %cst_47 {dimension_numbers = #tpu.dot_dimension_numbers<[1], [0], [0], [1], [0, 0, 1, 1], [], []>} : vector<8x32xbf16>, vector<32x2xbf16>, vector<8x2xf32> -> vector<8x2xf32>
    %c0_48 = arith.constant 0 : index
    %c0_49 = arith.constant 0 : index
    %327 = vector.load %arg6[%c0_48, %c0_49] : memref<8x2xf32, #tpu.memory_space<vmem>>, vector<8x2xf32>
    tpu.vector_store %arg6[%c0_48, %c0_49], %326 {strides = array<i32>} : memref<8x2xf32, #tpu.memory_space<vmem>>, vector<8x2xf32>,
    return
  }
  func.func @transform_0(%arg0: i32) -> (i32, i32, i32) {
    %c0_i32 = arith.constant 0 : i32
    %c0_i32_0 = arith.constant 0 : i32
    %c0_i32_1 = arith.constant 0 : i32
    return %arg0, %c0_i32, %c0_i32_0 : i32, i32, i32
  }
  func.func @transform_1(%arg0: i32) -> (i32, i32) {
    %c0_i32 = arith.constant 0 : i32
    %c0_i32_0 = arith.constant 0 : i32
    %c0_i32_1 = arith.constant 0 : i32
    return %c0_i32, %c0_i32_0 : i32, i32
  }
  func.func @transform_2(%arg0: i32) -> (i32, i32) {
    %c0_i32 = arith.constant 0 : i32
    %c0_i32_0 = arith.constant 0 : i32
    %c0_i32_1 = arith.constant 0 : i32
    return %c0_i32, %c0_i32_0 : i32, i32
  }
  func.func @transform_3(%arg0: i32) -> (i32, i32) {
    %c0_i32 = arith.constant 0 : i32
    %c0_i32_0 = arith.constant 0 : i32
    %c0_i32_1 = arith.constant 0 : i32
    return %c0_i32, %c0_i32_0 : i32, i32
  }
  func.func @transform_4(%arg0: i32) -> (i32, i32) {
    %c0_i32 = arith.constant 0 : i32
    %c0_i32_0 = arith.constant 0 : i32
    %c0_i32_1 = arith.constant 0 : i32
    return %c0_i32, %c0_i32_0 : i32, i32
  }
  func.func @transform_5(%arg0: i32) -> (i32, i32) {
    %c0_i32 = arith.constant 0 : i32
    %c0_i32_0 = arith.constant 0 : i32
    return %arg0, %c0_i32 : i32, i32
  }
}

</mosaic_0001>

<llo_original>
// kernel: tpu_custom_call.1
$region0: #{tpu_custom_call.1}
  #allocation0 [shape = 'u32[]', space=smem, size = 0x4, offset = 0x4, fixed_abs, tag = 'smem constant byte address 0x4 - core index']
  #allocation1 [shape = 'u32[144,128]{1,0:T(1,128)}', space=vmem, size = 0x12000, scoped, tag = 'internal scratch']
  %s0 = inlined_call_operand.vmem [shape: bf16[1,64,4], index: 0, kind: input, shape index: {}]
  %s1 = inlined_call_operand.vmem [shape: bf16[4,128], index: 1, kind: input, shape index: {}]
  %s2 = inlined_call_operand.vmem [shape: bf16[32,256], index: 2, kind: input, shape index: {}]
  %s3 = inlined_call_operand.vmem [shape: bf16[32,128], index: 3, kind: input, shape index: {}]
  %s4 = inlined_call_operand.vmem [shape: bf16[32,2], index: 4, kind: input, shape index: {}]
  %s5 = inlined_call_operand.vmem [shape: f32[8,2], index: 5, kind: output, shape index: {}]
  %s6 = sld [smem:[#allocation0]]
  $region30: #{tpu_custom_call.1} parent=0
    _
  %s8 = ssub.s32 1, %s6
  %s9 = scalar_select 0, %s8, %s6
  // Predicated region
  $region2: #{tpu_custom_call.1} parent=0 // pred_check
    _
  $region3: #{tpu_custom_call.1} parent=0 // pred_check_branch
    %11 = sbr.rel (0) target = $region5
  $region4: #{tpu_custom_call.1} parent=0 // pred_region
    _
  $region5: #{tpu_custom_call.1} parent=0 // pred_fallthru
    _
  // Predicated region
  $region6: #{tpu_custom_call.1} parent=0 // pred_check
    _
  $region7: #{tpu_custom_call.1} parent=0 // pred_check_branch
    %13 = sbr.rel (0) target = $region9
  $region8: #{tpu_custom_call.1} parent=0 // pred_region
    _
  $region9: #{tpu_custom_call.1} parent=0 // pred_fallthru
    _
  // Predicated region
  $region10: #{tpu_custom_call.1} parent=0 // pred_check
    _
  $region11: #{tpu_custom_call.1} parent=0 // pred_check_branch
    %15 = sbr.rel (0) target = $region13
  $region12: #{tpu_custom_call.1} parent=0 // pred_region
    _
  $region13: #{tpu_custom_call.1} parent=0 // pred_fallthru
    _
  // Predicated region
  $region14: #{tpu_custom_call.1} parent=0 // pred_check
    _
  $region15: #{tpu_custom_call.1} parent=0 // pred_check_branch
    %17 = sbr.rel (0) target = $region17
  $region16: #{tpu_custom_call.1} parent=0 // pred_region
    _
  $region17: #{tpu_custom_call.1} parent=0 // pred_fallthru
    _
  // Predicated region
  $region18: #{tpu_custom_call.1} parent=0 // pred_check
    _
  $region19: #{tpu_custom_call.1} parent=0 // pred_check_branch
    %19 = sbr.rel (0) target = $region21
  $region20: #{tpu_custom_call.1} parent=0 // pred_region
    _
  $region21: #{tpu_custom_call.1} parent=0 // pred_fallthru
    _
  %v21 = vld [vmem:[%s0] sm:$0xf]
  %v22 = vld [vmem:[%s0 + $0x4] sm:$0xf]
  %v23 = vld [vmem:[%s0 + $0x8] sm:$0xf]
  %v24 = vld [vmem:[%s0 + $0xc] sm:$0xf]
  %v25 = vld [vmem:[%s0 + $0x10] sm:$0xf]
  %v26 = vld [vmem:[%s0 + $0x14] sm:$0xf]
  %v27 = vld [vmem:[%s0 + $0x18] sm:$0xf]
  %v28 = vld [vmem:[%s0 + $0x1c] sm:$0xf]
  %v29 = vld [vmem:[%s1] sm:$0x3]
  %v38 = vunpack.c.l.b16 %v21
  %v39 = vunpack.c.l.b16 %v22
  %v40 = vunpack.c.l.b16 %v23
  %v41 = vunpack.c.l.b16 %v24
  %v42 = vunpack.c.l.b16 %v25
  %v43 = vunpack.c.l.b16 %v26
  %v44 = vunpack.c.l.b16 %v27
  %v45 = vunpack.c.l.b16 %v28
  %v46 = vpack.c.b16 %v39, %v38
  %v47 = vpack.c.b16 %v41, %v40
  %v48 = vpack.c.b16 %v43, %v42
  %v49 = vpack.c.b16 %v45, %v44
  %vm50 = vcmask 31744
  %v52 = vsel %vm50, %v46, 0
  %v55 = vsel %vm50, %v47, 0
  %v58 = vsel %vm50, %v48, 0
  %v61 = vsel %vm50, %v49, 0
  %vm63 = vcmask 1041408
  %v65 = vsel %vm63, %v29, 0
  %67 = vmatprep.subr.bf16.mxu0 0
  %68 = vmatpush1.bf16.msra.mxu0 %v65
  %69 = vmatprep.subr.bf16.mxu0 0
  %70 = vmatpush1.bf16.msra.mxu0 0
  %71 = vmatprep.subr.bf16.mxu0 0
  %72 = vmatpush1.bf16.msra.mxu0 0
  %73 = vmatprep.subr.bf16.mxu0 0
  %74 = vmatpush1.bf16.msra.mxu0 0
  %75 = vmatprep.subr.bf16.mxu0 0
  %76 = vmatpush1.bf16.msra.mxu0 0
  %77 = vmatprep.subr.bf16.mxu0 0
  %78 = vmatpush1.bf16.msra.mxu0 0
  %79 = vmatprep.subr.bf16.mxu0 0
  %80 = vmatpush1.bf16.msra.mxu0 0
  %81 = vmatprep.subr.bf16.mxu0 0
  %82 = vmatpush1.bf16.msra.mxu0 0
  %83 = vmatprep.subr.bf16.mxu0 0
  %84 = vmatpush1.bf16.msra.mxu0 0
  %85 = vmatprep.subr.bf16.mxu0 0
  %86 = vmatpush1.bf16.msra.mxu0 0
  %87 = vmatprep.subr.bf16.mxu0 0
  %88 = vmatpush1.bf16.msra.mxu0 0
  %89 = vmatprep.subr.bf16.mxu0 0
  %90 = vmatpush1.bf16.msra.mxu0 0
  %91 = vmatprep.subr.bf16.mxu0 0
  %92 = vmatpush1.bf16.msra.mxu0 0
  %93 = vmatprep.subr.bf16.mxu0 0
  %94 = vmatpush1.bf16.msra.mxu0 0
  %95 = vmatprep.subr.bf16.mxu0 0
  %96 = vmatpush1.bf16.msra.mxu0 0
  %97 = vmatprep.subr.bf16.mxu0 0
  %98 = vmatpush1.bf16.msra.mxu0 0
  %99 = vmatprep.mubr.bf16.mxu0 0
  %100 = vmatmul.mubr.bf16.gmra.mrb[0].mxu0 %v52
  %v101 = vpop.f32.mrb[0].mxu0
  %v102 = vadd.f32 0.0, %v101
  %v103 = vpop.f32.mrb[0].mxu0
  %v104 = vpop.f32.mrb[0].mxu0
  %v105 = vadd.f32 0.0, %v104
  %v106 = vpop.f32.mrb[0].mxu0
  %107 = vmatprep.mubr.bf16.mxu0 0
  %108 = vmatmul.mubr.bf16.gmra.mrb[0].mxu0 %v55
  %v109 = vpop.f32.mrb[0].mxu0
  %v110 = vadd.f32 0.0, %v109
  %v111 = vpop.f32.mrb[0].mxu0
  %v112 = vpop.f32.mrb[0].mxu0
  %v113 = vadd.f32 0.0, %v112
  %v114 = vpop.f32.mrb[0].mxu0
  %115 = vmatprep.mubr.bf16.mxu0 0
  %116 = vmatmul.mubr.bf16.gmra.mrb[0].mxu0 %v58
  %v117 = vpop.f32.mrb[0].mxu0
  %v118 = vadd.f32 0.0, %v117
  %v119 = vpop.f32.mrb[0].mxu0
  %v120 = vpop.f32.mrb[0].mxu0
  %v121 = vadd.f32 0.0, %v120
  %v122 = vpop.f32.mrb[0].mxu0
  %123 = vmatprep.mubr.bf16.mxu0 0
  %124 = vmatmul.mubr.bf16.gmra.mrb[0].mxu0 %v61
  %v125 = vpop.f32.mrb[0].mxu0
  %v126 = vadd.f32 0.0, %v125
  %v127 = vpop.f32.mrb[0].mxu0
  %v128 = vpop.f32.mrb[0].mxu0
  %v129 = vadd.f32 0.0, %v128
  %v130 = vpop.f32.mrb[0].mxu0
  %131 = vdwg.mxu0
  %v132 = vld [vmem:[%s2] sm:$0xff]
  %v133 = vld [vmem:[%s2 + $0x8] sm:$0xff]
  %v134 = vld [vmem:[%s2 + $0x10] sm:$0xff]
  %v135 = vld [vmem:[%s2 + $0x18] sm:$0xff]
  %v136 = vld [vmem:[%s3] sm:$0xf]
  %v137 = vld [vmem:[%s3 + $0x4] sm:$0xf]
  %v138 = vld [vmem:[%s3 + $0x8] sm:$0xf]
  %v139 = vld [vmem:[%s3 + $0xc] sm:$0xf]
  %v144 = vunpack.c.l.b16 %v132
  %v145 = vunpack.c.h.b16 %v132
  %v146 = vunpack.c.l.b16 %v133
  %v147 = vunpack.c.h.b16 %v133
  %v148 = vunpack.c.l.b16 %v134
  %v149 = vunpack.c.h.b16 %v134
  %v150 = vunpack.c.l.b16 %v135
  %v151 = vunpack.c.h.b16 %v135
  %v152 = vpack.c.b16 %v146, %v144
  %v153 = vpack.c.b16 %v147, %v145
  %v154 = vpack.c.b16 %v150, %v148
  %v155 = vpack.c.b16 %v151, %v149
  %vm160 = vcmask 261120
  %v162 = vsel %vm160, 0, 0
  %164 = vmatprep.subr.bf16.mxu0 %v153
  %165 = vmatpush1.bf16.msra.mxu0 %v152
  %166 = vmatprep.subr.bf16.mxu0 %v155
  %167 = vmatpush1.bf16.msra.mxu0 %v154
  %168 = vmatprep.subr.bf16.mxu0 0
  %169 = vmatpush1.bf16.msra.mxu0 0
  %170 = vmatprep.subr.bf16.mxu0 0
  %171 = vmatpush1.bf16.msra.mxu0 0
  %172 = vmatprep.subr.bf16.mxu0 0
  %173 = vmatpush1.bf16.msra.mxu0 0
  %174 = vmatprep.subr.bf16.mxu0 0
  %175 = vmatpush1.bf16.msra.mxu0 0
  %176 = vmatprep.subr.bf16.mxu0 0
  %177 = vmatpush1.bf16.msra.mxu0 0
  %178 = vmatprep.subr.bf16.mxu0 0
  %179 = vmatpush1.bf16.msra.mxu0 0
  %180 = vmatprep.subr.bf16.mxu0 0
  %181 = vmatpush1.bf16.msra.mxu0 0
  %182 = vmatprep.subr.bf16.mxu0 0
  %183 = vmatpush1.bf16.msra.mxu0 0
  %184 = vmatprep.subr.bf16.mxu0 0
  %185 = vmatpush1.bf16.msra.mxu0 0
  %186 = vmatprep.subr.bf16.mxu0 0
  %187 = vmatpush1.bf16.msra.mxu0 0
  %188 = vmatprep.subr.bf16.mxu0 0
  %189 = vmatpush1.bf16.msra.mxu0 0
  %190 = vmatprep.subr.bf16.mxu0 0
  %191 = vmatpush1.bf16.msra.mxu0 0
  %192 = vmatprep.subr.bf16.mxu0 0
  %193 = vmatpush1.bf16.msra.mxu0 0
  %194 = vmatprep.subr.bf16.mxu0 0
  %195 = vmatpush1.bf16.msra.mxu0 0
  %196 = vmatprep.mubr.bf16.mxu0 0
  %197 = vmatmul.mubr.bf16.gmra.mrb[0].mxu0 %v162
  %v198 = vpop.f32.mrb[0].mxu0
  %v199 = vadd.f32 0.0, %v198
  %v200 = vpop.f32.mrb[0].mxu0
  %v201 = vpop.f32.mrb[0].mxu0
  %v202 = vpop.f32.mrb[0].mxu0
  %203 = vdwg.mxu0
  %v204 = vadd.f32 %v102, %v199
  %v205 = vxor.u32 %v204, 2147483648
  %v206 = vmul.f32 %v205, 1.442695
  %v207 = vpow.pop %v206
  %v208 = vadd.f32 %v207, 1.0
  %v209 = vrcp.pop %v208
  %v210 = vmul.f32 1.0, %v209
  %v211 = vtanh.pop %v204
  %v212 = vmul.f32 %v210, 0.0
  %214 = vrot.lane.b32.xlu0 %v211, 64
  %v215 = vpop.permute.xlu0 %214
  %v217 = vmul.f32 %v210, %v215
  %219 = vrot.lane.b32.xlu0 %v217, 32
  %v220 = vpop.permute.xlu0 %219
  %v222 = vadd.f32 %v212, %v220
  %v223 = vtanh.pop %v222
  %225 = vrot.lane.b32.xlu0 %v223, 64
  %v226 = vpop.permute.xlu0 %225
  %v228 = vmul.f32 %v210, %v226
  %v229 = vpack.c.bf16 %v228, %v228
  %231 = vrot.lane.b32.xlu0 %v229, 32
  %v232 = vpop.permute.xlu0 %231
  %v234 = vsel %vm160, %v232, 0
  %236 = vmatprep.subr.bf16.mxu0 %v153
  %237 = vmatpush1.bf16.msra.mxu0 %v152
  %238 = vmatprep.subr.bf16.mxu0 %v155
  %239 = vmatpush1.bf16.msra.mxu0 %v154
  %240 = vmatprep.subr.bf16.mxu0 0
  %241 = vmatpush1.bf16.msra.mxu0 0
  %242 = vmatprep.subr.bf16.mxu0 0
  %243 = vmatpush1.bf16.msra.mxu0 0
  %244 = vmatprep.subr.bf16.mxu0 0
  %245 = vmatpush1.bf16.msra.mxu0 0
  %246 = vmatprep.subr.bf16.mxu0 0
  %247 = vmatpush1.bf16.msra.mxu0 0
  %248 = vmatprep.subr.bf16.mxu0 0
  %249 = vmatpush1.bf16.msra.mxu0 0
  %250 = vmatprep.subr.bf16.mxu0 0
  %251 = vmatpush1.bf16.msra.mxu0 0
  %252 = vmatprep.subr.bf16.mxu0 0
  %253 = vmatpush1.bf16.msra.mxu0 0
  %254 = vmatprep.subr.bf16.mxu0 0
  %255 = vmatpush1.bf16.msra.mxu0 0
  %256 = vmatprep.subr.bf16.mxu0 0
  %257 = vmatpush1.bf16.msra.mxu0 0
  %258 = vmatprep.subr.bf16.mxu0 0
  %259 = vmatpush1.bf16.msra.mxu0 0
  %260 = vmatprep.subr.bf16.mxu0 0
  %261 = vmatpush1.bf16.msra.mxu0 0
  %262 = vmatprep.subr.bf16.mxu0 0
  %263 = vmatpush1.bf16.msra.mxu0 0
  %264 = vmatprep.subr.bf16.mxu0 0
  %265 = vmatpush1.bf16.msra.mxu0 0
  %266 = vmatprep.subr.bf16.mxu0 0
  %267 = vmatpush1.bf16.msra.mxu0 0
  %268 = vmatprep.mubr.bf16.mxu0 0
  %269 = vmatmul.mubr.bf16.gmra.mrb[0].mxu0 %v234
  %v270 = vpop.f32.mrb[0].mxu0
  %v271 = vadd.f32 0.0, %v270
  %v272 = vpop.f32.mrb[0].mxu0
  %v273 = vadd.f32 0.0, %v272
  %v274 = vpop.f32.mrb[0].mxu0
  %v275 = vpop.f32.mrb[0].mxu0
  %276 = vdwg.mxu0
  %v281 = vunpack.c.l.b16 %v136
  %v282 = vunpack.c.l.b16 %v137
  %v283 = vunpack.c.l.b16 %v138
  %v284 = vunpack.c.l.b16 %v139
  %v285 = vpack.c.b16 %v282, %v281
  %v286 = vpack.c.b16 %v284, %v283
  %289 = vmatprep.subr.bf16.mxu0 0
  %290 = vmatpush1.bf16.msra.mxu0 %v285
  %291 = vmatprep.subr.bf16.mxu0 0
  %292 = vmatpush1.bf16.msra.mxu0 %v286
  %293 = vmatprep.subr.bf16.mxu0 0
  %294 = vmatpush1.bf16.msra.mxu0 0
  %295 = vmatprep.subr.bf16.mxu0 0
  %296 = vmatpush1.bf16.msra.mxu0 0
  %297 = vmatprep.subr.bf16.mxu0 0
  %298 = vmatpush1.bf16.msra.mxu0 0
  %299 = vmatprep.subr.bf16.mxu0 0
  %300 = vmatpush1.bf16.msra.mxu0 0
  %301 = vmatprep.subr.bf16.mxu0 0
  %302 = vmatpush1.bf16.msra.mxu0 0
  %303 = vmatprep.subr.bf16.mxu0 0
  %304 = vmatpush1.bf16.msra.mxu0 0
  %305 = vmatprep.subr.bf16.mxu0 0
  %306 = vmatpush1.bf16.msra.mxu0 0
  %307 = vmatprep.subr.bf16.mxu0 0
  %308 = vmatpush1.bf16.msra.mxu0 0
  %309 = vmatprep.subr.bf16.mxu0 0
  %310 = vmatpush1.bf16.msra.mxu0 0
  %311 = vmatprep.subr.bf16.mxu0 0
  %312 = vmatpush1.bf16.msra.mxu0 0
  %313 = vmatprep.subr.bf16.mxu0 0
  %314 = vmatpush1.bf16.msra.mxu0 0
  %315 = vmatprep.subr.bf16.mxu0 0
  %316 = vmatpush1.bf16.msra.mxu0 0
  %317 = vmatprep.subr.bf16.mxu0 0
  %318 = vmatpush1.bf16.msra.mxu0 0
  %319 = vmatprep.subr.bf16.mxu0 0
  %320 = vmatpush1.bf16.msra.mxu0 0
  %321 = vmatprep.mubr.bf16.mxu0 0
  %322 = vmatmul.mubr.bf16.gmra.mrb[0].mxu0 %v162
  %v323 = vpop.f32.mrb[0].mxu0
  %v324 = vadd.f32 0.0, %v323
  %v325 = vpop.f32.mrb[0].mxu0
  %v326 = vpop.f32.mrb[0].mxu0
  %v327 = vpop.f32.mrb[0].mxu0
  %328 = vdwg.mxu0
  %v329 = vadd.f32 %v105, %v271
  %v330 = vxor.u32 %v329, 2147483648
  %v331 = vmul.f32 %v330, 1.442695
  %v332 = vpow.pop %v331
  %v333 = vadd.f32 %v332, 1.0
  %v334 = vrcp.pop %v333
  %v335 = vmul.f32 1.0, %v334
  %v336 = vtanh.pop %v329
  %v337 = vmul.f32 %v335, %v222
  %339 = vrot.lane.b32.xlu0 %v336, 64
  %v340 = vpop.permute.xlu0 %339
  %v342 = vmul.f32 %v335, %v340
  %344 = vrot.lane.b32.xlu0 %v342, 32
  %v345 = vpop.permute.xlu0 %344
  %v347 = vadd.f32 %v337, %v345
  %v348 = vtanh.pop %v347
  %350 = vrot.lane.b32.xlu0 %v348, 64
  %v351 = vpop.permute.xlu0 %350
  %v353 = vmul.f32 %v335, %v351
  %v354 = vadd.f32 %v273, %v324
  %v355 = vxor.u32 %v354, 2147483648
  %v356 = vmul.f32 %v355, 1.442695
  %v357 = vpow.pop %v356
  %v358 = vadd.f32 %v357, 1.0
  %v359 = vrcp.pop %v358
  %v360 = vmul.f32 1.0, %v359
  %v361 = vtanh.pop %v354
  %v362 = vmul.f32 %v360, 0.0
  %364 = vrot.lane.b32.xlu0 %v361, 64
  %v365 = vpop.permute.xlu0 %364
  %v367 = vmul.f32 %v360, %v365
  %369 = vrot.lane.b32.xlu0 %v367, 32
  %v370 = vpop.permute.xlu0 %369
  %v372 = vadd.f32 %v362, %v370
  %v373 = vtanh.pop %v372
  %375 = vrot.lane.b32.xlu0 %v373, 64
  %v376 = vpop.permute.xlu0 %375
  %v378 = vmul.f32 %v360, %v376
  %v379 = vpack.c.bf16 %v353, %v353
  %381 = vrot.lane.b32.xlu0 %v379, 32
  %v382 = vpop.permute.xlu0 %381
  %v384 = vsel %vm160, %v382, 0
  %386 = vmatprep.subr.bf16.mxu0 %v153
  %387 = vmatpush1.bf16.msra.mxu0 %v152
  %388 = vmatprep.subr.bf16.mxu0 %v155
  %389 = vmatpush1.bf16.msra.mxu0 %v154
  %390 = vmatprep.subr.bf16.mxu0 0
  %391 = vmatpush1.bf16.msra.mxu0 0
  %392 = vmatprep.subr.bf16.mxu0 0
  %393 = vmatpush1.bf16.msra.mxu0 0
  %394 = vmatprep.subr.bf16.mxu0 0
  %395 = vmatpush1.bf16.msra.mxu0 0
  %396 = vmatprep.subr.bf16.mxu0 0
  %397 = vmatpush1.bf16.msra.mxu0 0
  %398 = vmatprep.subr.bf16.mxu0 0
  %399 = vmatpush1.bf16.msra.mxu0 0
  %400 = vmatprep.subr.bf16.mxu0 0
  %401 = vmatpush1.bf16.msra.mxu0 0
  %402 = vmatprep.subr.bf16.mxu0 0
  %403 = vmatpush1.bf16.msra.mxu0 0
  %404 = vmatprep.subr.bf16.mxu0 0
  %405 = vmatpush1.bf16.msra.mxu0 0
  %406 = vmatprep.subr.bf16.mxu0 0
  %407 = vmatpush1.bf16.msra.mxu0 0
  %408 = vmatprep.subr.bf16.mxu0 0
  %409 = vmatpush1.bf16.msra.mxu0 0
  %410 = vmatprep.subr.bf16.mxu0 0
  %411 = vmatpush1.bf16.msra.mxu0 0
  %412 = vmatprep.subr.bf16.mxu0 0
  %413 = vmatpush1.bf16.msra.mxu0 0
  %414 = vmatprep.subr.bf16.mxu0 0
  %415 = vmatpush1.bf16.msra.mxu0 0
  %416 = vmatprep.subr.bf16.mxu0 0
  %417 = vmatpush1.bf16.msra.mxu0 0
  %418 = vmatprep.mubr.bf16.mxu0 0
  %419 = vmatmul.mubr.bf16.gmra.mrb[0].mxu0 %v384
  %v420 = vpop.f32.mrb[0].mxu0
  %v421 = vadd.f32 0.0, %v420
  %v422 = vpop.f32.mrb[0].mxu0
  %v423 = vadd.f32 0.0, %v422
  %v424 = vpop.f32.mrb[0].mxu0
  %v425 = vpop.f32.mrb[0].mxu0
  %426 = vdwg.mxu0
  %v427 = vpack.c.bf16 %v378, %v378
  %429 = vrot.lane.b32.xlu0 %v427, 32
  %v430 = vpop.permute.xlu0 %429
  %v432 = vsel %vm160, %v430, 0
  %434 = vmatprep.subr.bf16.mxu0 0
  %435 = vmatpush1.bf16.msra.mxu0 %v285
  %436 = vmatprep.subr.bf16.mxu0 0
  %437 = vmatpush1.bf16.msra.mxu0 %v286
  %438 = vmatprep.subr.bf16.mxu0 0
  %439 = vmatpush1.bf16.msra.mxu0 0
  %440 = vmatprep.subr.bf16.mxu0 0
  %441 = vmatpush1.bf16.msra.mxu0 0
  %442 = vmatprep.subr.bf16.mxu0 0
  %443 = vmatpush1.bf16.msra.mxu0 0
  %444 = vmatprep.subr.bf16.mxu0 0
  %445 = vmatpush1.bf16.msra.mxu0 0
  %446 = vmatprep.subr.bf16.mxu0 0
  %447 = vmatpush1.bf16.msra.mxu0 0
  %448 = vmatprep.subr.bf16.mxu0 0
  %449 = vmatpush1.bf16.msra.mxu0 0
  %450 = vmatprep.subr.bf16.mxu0 0
  %451 = vmatpush1.bf16.msra.mxu0 0
  %452 = vmatprep.subr.bf16.mxu0 0
  %453 = vmatpush1.bf16.msra.mxu0 0
  %454 = vmatprep.subr.bf16.mxu0 0
  %455 = vmatpush1.bf16.msra.mxu0 0
  %456 = vmatprep.subr.bf16.mxu0 0
  %457 = vmatpush1.bf16.msra.mxu0 0
  %458 = vmatprep.subr.bf16.mxu0 0
  %459 = vmatpush1.bf16.msra.mxu0 0
  %460 = vmatprep.subr.bf16.mxu0 0
  %461 = vmatpush1.bf16.msra.mxu0 0
  %462 = vmatprep.subr.bf16.mxu0 0
  %463 = vmatpush1.bf16.msra.mxu0 0
  %464 = vmatprep.subr.bf16.mxu0 0
  %465 = vmatpush1.bf16.msra.mxu0 0
  %466 = vmatprep.mubr.bf16.mxu0 0
  %467 = vmatmul.mubr.bf16.gmra.mrb[0].mxu0 %v432
  %v468 = vpop.f32.mrb[0].mxu0
  %v469 = vadd.f32 0.0, %v468
  %v470 = vpop.f32.mrb[0].mxu0
  %v471 = vpop.f32.mrb[0].mxu0
  %v472 = vpop.f32.mrb[0].mxu0
  %473 = vdwg.mxu0
  %v474 = vadd.f32 %v110, %v421
  %v475 = vxor.u32 %v474, 2147483648
  %v476 = vmul.f32 %v475, 1.442695
  %v477 = vpow.pop %v476
  %v478 = vadd.f32 %v477, 1.0
  %v479 = vrcp.pop %v478
  %v480 = vmul.f32 1.0, %v479
  %v481 = vtanh.pop %v474
  %v482 = vmul.f32 %v480, %v347
  %484 = vrot.lane.b32.xlu0 %v481, 64
  %v485 = vpop.permute.xlu0 %484
  %v487 = vmul.f32 %v480, %v485
  %489 = vrot.lane.b32.xlu0 %v487, 32
  %v490 = vpop.permute.xlu0 %489
  %v492 = vadd.f32 %v482, %v490
  %v493 = vtanh.pop %v492
  %495 = vrot.lane.b32.xlu0 %v493, 64
  %v496 = vpop.permute.xlu0 %495
  %v498 = vmul.f32 %v480, %v496
  %v499 = vadd.f32 %v423, %v469
  %v500 = vxor.u32 %v499, 2147483648
  %v501 = vmul.f32 %v500, 1.442695
  %v502 = vpow.pop %v501
  %v503 = vadd.f32 %v502, 1.0
  %v504 = vrcp.pop %v503
  %v505 = vmul.f32 1.0, %v504
  %v506 = vtanh.pop %v499
  %v507 = vmul.f32 %v505, %v372
  %509 = vrot.lane.b32.xlu0 %v506, 64
  %v510 = vpop.permute.xlu0 %509
  %v512 = vmul.f32 %v505, %v510
  %514 = vrot.lane.b32.xlu0 %v512, 32
  %v515 = vpop.permute.xlu0 %514
  %v517 = vadd.f32 %v507, %v515
  %v518 = vtanh.pop %v517
  %520 = vrot.lane.b32.xlu0 %v518, 64
  %v521 = vpop.permute.xlu0 %520
  %v523 = vmul.f32 %v505, %v521
  %v524 = vpack.c.bf16 %v498, %v498
  %526 = vrot.lane.b32.xlu0 %v524, 32
  %v527 = vpop.permute.xlu0 %526
  %v529 = vsel %vm160, %v527, 0
  %531 = vmatprep.subr.bf16.mxu0 %v153
  %532 = vmatpush1.bf16.msra.mxu0 %v152
  %533 = vmatprep.subr.bf16.mxu0 %v155
  %534 = vmatpush1.bf16.msra.mxu0 %v154
  %535 = vmatprep.subr.bf16.mxu0 0
  %536 = vmatpush1.bf16.msra.mxu0 0
  %537 = vmatprep.subr.bf16.mxu0 0
  %538 = vmatpush1.bf16.msra.mxu0 0
  %539 = vmatprep.subr.bf16.mxu0 0
  %540 = vmatpush1.bf16.msra.mxu0 0
  %541 = vmatprep.subr.bf16.mxu0 0
  %542 = vmatpush1.bf16.msra.mxu0 0
  %543 = vmatprep.subr.bf16.mxu0 0
  %544 = vmatpush1.bf16.msra.mxu0 0
  %545 = vmatprep.subr.bf16.mxu0 0
  %546 = vmatpush1.bf16.msra.mxu0 0
  %547 = vmatprep.subr.bf16.mxu0 0
  %548 = vmatpush1.bf16.msra.mxu0 0
  %549 = vmatprep.subr.bf16.mxu0 0
  %550 = vmatpush1.bf16.msra.mxu0 0
  %551 = vmatprep.subr.bf16.mxu0 0
  %552 = vmatpush1.bf16.msra.mxu0 0
  %553 = vmatprep.subr.bf16.mxu0 0
  %554 = vmatpush1.bf16.msra.mxu0 0
  %555 = vmatprep.subr.bf16.mxu0 0
  %556 = vmatpush1.bf16.msra.mxu0 0
  %557 = vmatprep.subr.bf16.mxu0 0
  %558 = vmatpush1.bf16.msra.mxu0 0
  %559 = vmatprep.subr.bf16.mxu0 0
  %560 = vmatpush1.bf16.msra.mxu0 0
  %561 = vmatprep.subr.bf16.mxu0 0
  %562 = vmatpush1.bf16.msra.mxu0 0
  %563 = vmatprep.mubr.bf16.mxu0 0
  %564 = vmatmul.mubr.bf16.gmra.mrb[0].mxu0 %v529
  %v565 = vpop.f32.mrb[0].mxu0
  %v566 = vadd.f32 0.0, %v565
  %v567 = vpop.f32.mrb[0].mxu0
  %v568 = vadd.f32 0.0, %v567
  %v569 = vpop.f32.mrb[0].mxu0
  %v570 = vpop.f32.mrb[0].mxu0
  %571 = vdwg.mxu0
  %v572 = vpack.c.bf16 %v523, %v523
  %574 = vrot.lane.b32.xlu0 %v572, 32
  %v575 = vpop.permute.xlu0 %574
  %v577 = vsel %vm160, %v575, 0
  %579 = vmatprep.subr.bf16.mxu0 0
  %580 = vmatpush1.bf16.msra.mxu0 %v285
  %581 = vmatprep.subr.bf16.mxu0 0
  %582 = vmatpush1.bf16.msra.mxu0 %v286
  %583 = vmatprep.subr.bf16.mxu0 0
  %584 = vmatpush1.bf16.msra.mxu0 0
  %585 = vmatprep.subr.bf16.mxu0 0
  %586 = vmatpush1.bf16.msra.mxu0 0
  %587 = vmatprep.subr.bf16.mxu0 0
  %588 = vmatpush1.bf16.msra.mxu0 0
  %589 = vmatprep.subr.bf16.mxu0 0
  %590 = vmatpush1.bf16.msra.mxu0 0
  %591 = vmatprep.subr.bf16.mxu0 0
  %592 = vmatpush1.bf16.msra.mxu0 0
  %593 = vmatprep.subr.bf16.mxu0 0
  %594 = vmatpush1.bf16.msra.mxu0 0
  %595 = vmatprep.subr.bf16.mxu0 0
  %596 = vmatpush1.bf16.msra.mxu0 0
  %597 = vmatprep.subr.bf16.mxu0 0
  %598 = vmatpush1.bf16.msra.mxu0 0
  %599 = vmatprep.subr.bf16.mxu0 0
  %600 = vmatpush1.bf16.msra.mxu0 0
  %601 = vmatprep.subr.bf16.mxu0 0
  %602 = vmatpush1.bf16.msra.mxu0 0
  %603 = vmatprep.subr.bf16.mxu0 0
  %604 = vmatpush1.bf16.msra.mxu0 0
  %605 = vmatprep.subr.bf16.mxu0 0
  %606 = vmatpush1.bf16.msra.mxu0 0
  %607 = vmatprep.subr.bf16.mxu0 0
  %608 = vmatpush1.bf16.msra.mxu0 0
  %609 = vmatprep.subr.bf16.mxu0 0
  %610 = vmatpush1.bf16.msra.mxu0 0
  %611 = vmatprep.mubr.bf16.mxu0 0
  %612 = vmatmul.mubr.bf16.gmra.mrb[0].mxu0 %v577
  %v613 = vpop.f32.mrb[0].mxu0
  %v614 = vadd.f32 0.0, %v613
  %v615 = vpop.f32.mrb[0].mxu0
  %v616 = vpop.f32.mrb[0].mxu0
  %v617 = vpop.f32.mrb[0].mxu0
  %618 = vdwg.mxu0
  %v619 = vadd.f32 %v113, %v566
  %v620 = vxor.u32 %v619, 2147483648
  %v621 = vmul.f32 %v620, 1.442695
  %v622 = vpow.pop %v621
  %v623 = vadd.f32 %v622, 1.0
  %v624 = vrcp.pop %v623
  %v625 = vmul.f32 1.0, %v624
  %v626 = vtanh.pop %v619
  %v627 = vmul.f32 %v625, %v492
  %629 = vrot.lane.b32.xlu0 %v626, 64
  %v630 = vpop.permute.xlu0 %629
  %v632 = vmul.f32 %v625, %v630
  %634 = vrot.lane.b32.xlu0 %v632, 32
  %v635 = vpop.permute.xlu0 %634
  %v637 = vadd.f32 %v627, %v635
  %v638 = vtanh.pop %v637
  %640 = vrot.lane.b32.xlu0 %v638, 64
  %v641 = vpop.permute.xlu0 %640
  %v643 = vmul.f32 %v625, %v641
  %v644 = vadd.f32 %v568, %v614
  %v645 = vxor.u32 %v644, 2147483648
  %v646 = vmul.f32 %v645, 1.442695
  %v647 = vpow.pop %v646
  %v648 = vadd.f32 %v647, 1.0
  %v649 = vrcp.pop %v648
  %v650 = vmul.f32 1.0, %v649
  %v651 = vtanh.pop %v644
  %v652 = vmul.f32 %v650, %v517
  %654 = vrot.lane.b32.xlu0 %v651, 64
  %v655 = vpop.permute.xlu0 %654
  %v657 = vmul.f32 %v650, %v655
  %659 = vrot.lane.b32.xlu0 %v657, 32
  %v660 = vpop.permute.xlu0 %659
  %v662 = vadd.f32 %v652, %v660
  %v663 = vtanh.pop %v662
  %665 = vrot.lane.b32.xlu0 %v663, 64
  %v666 = vpop.permute.xlu0 %665
  %v668 = vmul.f32 %v650, %v666
  %v669 = vpack.c.bf16 %v643, %v643
  %671 = vrot.lane.b32.xlu0 %v669, 32
  %v672 = vpop.permute.xlu0 %671
  %v674 = vsel %vm160, %v672, 0
  %676 = vmatprep.subr.bf16.mxu0 %v153
  %677 = vmatpush1.bf16.msra.mxu0 %v152
  %678 = vmatprep.subr.bf16.mxu0 %v155
  %679 = vmatpush1.bf16.msra.mxu0 %v154
  %680 = vmatprep.subr.bf16.mxu0 0
  %681 = vmatpush1.bf16.msra.mxu0 0
  %682 = vmatprep.subr.bf16.mxu0 0
  %683 = vmatpush1.bf16.msra.mxu0 0
  %684 = vmatprep.subr.bf16.mxu0 0
  %685 = vmatpush1.bf16.msra.mxu0 0
  %686 = vmatprep.subr.bf16.mxu0 0
  %687 = vmatpush1.bf16.msra.mxu0 0
  %688 = vmatprep.subr.bf16.mxu0 0
  %689 = vmatpush1.bf16.msra.mxu0 0
  %690 = vmatprep.subr.bf16.mxu0 0
  %691 = vmatpush1.bf16.msra.mxu0 0
  %692 = vmatprep.subr.bf16.mxu0 0
  %693 = vmatpush1.bf16.msra.mxu0 0
  %694 = vmatprep.subr.bf16.mxu0 0
  %695 = vmatpush1.bf16.msra.mxu0 0
  %696 = vmatprep.subr.bf16.mxu0 0
  %697 = vmatpush1.bf16.msra.mxu0 0
  %698 = vmatprep.subr.bf16.mxu0 0
  %699 = vmatpush1.bf16.msra.mxu0 0
  %700 = vmatprep.subr.bf16.mxu0 0
  %701 = vmatpush1.bf16.msra.mxu0 0
  %702 = vmatprep.subr.bf16.mxu0 0
  %703 = vmatpush1.bf16.msra.mxu0 0
  %704 = vmatprep.subr.bf16.mxu0 0
  %705 = vmatpush1.bf16.msra.mxu0 0
  %706 = vmatprep.subr.bf16.mxu0 0
  %707 = vmatpush1.bf16.msra.mxu0 0
  %708 = vmatprep.mubr.bf16.mxu0 0
  %709 = vmatmul.mubr.bf16.gmra.mrb[0].mxu0 %v674
  %v710 = vpop.f32.mrb[0].mxu0
  %v711 = vadd.f32 0.0, %v710
  %v712 = vpop.f32.mrb[0].mxu0
  %v713 = vadd.f32 0.0, %v712
  %v714 = vpop.f32.mrb[0].mxu0
  %v715 = vpop.f32.mrb[0].mxu0
  %716 = vdwg.mxu0
  %v717 = vpack.c.bf16 %v668, %v668
  %719 = vrot.lane.b32.xlu0 %v717, 32
  %v720 = vpop.permute.xlu0 %719
  %v722 = vsel %vm160, %v720, 0
  %724 = vmatprep.subr.bf16.mxu0 0
  %725 = vmatpush1.bf16.msra.mxu0 %v285
  %726 = vmatprep.subr.bf16.mxu0 0
  %727 = vmatpush1.bf16.msra.mxu0 %v286
  %728 = vmatprep.subr.bf16.mxu0 0
  %729 = vmatpush1.bf16.msra.mxu0 0
  %730 = vmatprep.subr.bf16.mxu0 0
  %731 = vmatpush1.bf16.msra.mxu0 0
  %732 = vmatprep.subr.bf16.mxu0 0
  %733 = vmatpush1.bf16.msra.mxu0 0
  %734 = vmatprep.subr.bf16.mxu0 0
  %735 = vmatpush1.bf16.msra.mxu0 0
  %736 = vmatprep.subr.bf16.mxu0 0
  %737 = vmatpush1.bf16.msra.mxu0 0
  %738 = vmatprep.subr.bf16.mxu0 0
  %739 = vmatpush1.bf16.msra.mxu0 0
  %740 = vmatprep.subr.bf16.mxu0 0
  %741 = vmatpush1.bf16.msra.mxu0 0
  %742 = vmatprep.subr.bf16.mxu0 0
  %743 = vmatpush1.bf16.msra.mxu0 0
  %744 = vmatprep.subr.bf16.mxu0 0
  %745 = vmatpush1.bf16.msra.mxu0 0
  %746 = vmatprep.subr.bf16.mxu0 0
  %747 = vmatpush1.bf16.msra.mxu0 0
  %748 = vmatprep.subr.bf16.mxu0 0
  %749 = vmatpush1.bf16.msra.mxu0 0
  %750 = vmatprep.subr.bf16.mxu0 0
  %751 = vmatpush1.bf16.msra.mxu0 0
  %752 = vmatprep.subr.bf16.mxu0 0
  %753 = vmatpush1.bf16.msra.mxu0 0
  %754 = vmatprep.subr.bf16.mxu0 0
  %755 = vmatpush1.bf16.msra.mxu0 0
  %756 = vmatprep.mubr.bf16.mxu0 0
  %757 = vmatmul.mubr.bf16.gmra.mrb[0].mxu0 %v722
  %v758 = vpop.f32.mrb[0].mxu0
  %v759 = vadd.f32 0.0, %v758
  %v760 = vpop.f32.mrb[0].mxu0
  %v761 = vpop.f32.mrb[0].mxu0
  %v762 = vpop.f32.mrb[0].mxu0
  %763 = vdwg.mxu0
  %v764 = vadd.f32 %v118, %v711
  %v765 = vxor.u32 %v764, 2147483648
  %v766 = vmul.f32 %v765, 1.442695
  %v767 = vpow.pop %v766
  %v768 = vadd.f32 %v767, 1.0
  %v769 = vrcp.pop %v768
  %v770 = vmul.f32 1.0, %v769
  %v771 = vtanh.pop %v764
  %v772 = vmul.f32 %v770, %v637
  %774 = vrot.lane.b32.xlu0 %v771, 64
  %v775 = vpop.permute.xlu0 %774
  %v777 = vmul.f32 %v770, %v775
  %779 = vrot.lane.b32.xlu0 %v777, 32
  %v780 = vpop.permute.xlu0 %779
  %v782 = vadd.f32 %v772, %v780
  %v783 = vtanh.pop %v782
  %785 = vrot.lane.b32.xlu0 %v783, 64
  %v786 = vpop.permute.xlu0 %785
  %v788 = vmul.f32 %v770, %v786
  %v789 = vadd.f32 %v713, %v759
  %v790 = vxor.u32 %v789, 2147483648
  %v791 = vmul.f32 %v790, 1.442695
  %v792 = vpow.pop %v791
  %v793 = vadd.f32 %v792, 1.0
  %v794 = vrcp.pop %v793
  %v795 = vmul.f32 1.0, %v794
  %v796 = vtanh.pop %v789
  %v797 = vmul.f32 %v795, %v662
  %799 = vrot.lane.b32.xlu0 %v796, 64
  %v800 = vpop.permute.xlu0 %799
  %v802 = vmul.f32 %v795, %v800
  %804 = vrot.lane.b32.xlu0 %v802, 32
  %v805 = vpop.permute.xlu0 %804
  %v807 = vadd.f32 %v797, %v805
  %v808 = vtanh.pop %v807
  %810 = vrot.lane.b32.xlu0 %v808, 64
  %v811 = vpop.permute.xlu0 %810
  %v813 = vmul.f32 %v795, %v811
  %v814 = vpack.c.bf16 %v788, %v788
  %816 = vrot.lane.b32.xlu0 %v814, 32
  %v817 = vpop.permute.xlu0 %816
  %v819 = vsel %vm160, %v817, 0
  %821 = vmatprep.subr.bf16.mxu0 %v153
  %822 = vmatpush1.bf16.msra.mxu0 %v152
  %823 = vmatprep.subr.bf16.mxu0 %v155
  %824 = vmatpush1.bf16.msra.mxu0 %v154
  %825 = vmatprep.subr.bf16.mxu0 0
  %826 = vmatpush1.bf16.msra.mxu0 0
  %827 = vmatprep.subr.bf16.mxu0 0
  %828 = vmatpush1.bf16.msra.mxu0 0
  %829 = vmatprep.subr.bf16.mxu0 0
  %830 = vmatpush1.bf16.msra.mxu0 0
  %831 = vmatprep.subr.bf16.mxu0 0
  %832 = vmatpush1.bf16.msra.mxu0 0
  %833 = vmatprep.subr.bf16.mxu0 0
  %834 = vmatpush1.bf16.msra.mxu0 0
  %835 = vmatprep.subr.bf16.mxu0 0
  %836 = vmatpush1.bf16.msra.mxu0 0
  %837 = vmatprep.subr.bf16.mxu0 0
  %838 = vmatpush1.bf16.msra.mxu0 0
  %839 = vmatprep.subr.bf16.mxu0 0
  %840 = vmatpush1.bf16.msra.mxu0 0
  %841 = vmatprep.subr.bf16.mxu0 0
  %842 = vmatpush1.bf16.msra.mxu0 0
  %843 = vmatprep.subr.bf16.mxu0 0
  %844 = vmatpush1.bf16.msra.mxu0 0
  %845 = vmatprep.subr.bf16.mxu0 0
  %846 = vmatpush1.bf16.msra.mxu0 0
  %847 = vmatprep.subr.bf16.mxu0 0
  %848 = vmatpush1.bf16.msra.mxu0 0
  %849 = vmatprep.subr.bf16.mxu0 0
  %850 = vmatpush1.bf16.msra.mxu0 0
  %851 = vmatprep.subr.bf16.mxu0 0
  %852 = vmatpush1.bf16.msra.mxu0 0
  %853 = vmatprep.mubr.bf16.mxu0 0
  %854 = vmatmul.mubr.bf16.gmra.mrb[0].mxu0 %v819
  %v855 = vpop.f32.mrb[0].mxu0
  %v856 = vadd.f32 0.0, %v855
  %v857 = vpop.f32.mrb[0].mxu0
  %v858 = vadd.f32 0.0, %v857
  %v859 = vpop.f32.mrb[0].mxu0
  %v860 = vpop.f32.mrb[0].mxu0
  %861 = vdwg.mxu0
  %v862 = vpack.c.bf16 %v813, %v813
  %864 = vrot.lane.b32.xlu0 %v862, 32
  %v865 = vpop.permute.xlu0 %864
  %v867 = vsel %vm160, %v865, 0
  %869 = vmatprep.subr.bf16.mxu0 0
  %870 = vmatpush1.bf16.msra.mxu0 %v285
  %871 = vmatprep.subr.bf16.mxu0 0
  %872 = vmatpush1.bf16.msra.mxu0 %v286
  %873 = vmatprep.subr.bf16.mxu0 0
  %874 = vmatpush1.bf16.msra.mxu0 0
  %875 = vmatprep.subr.bf16.mxu0 0
  %876 = vmatpush1.bf16.msra.mxu0 0
  %877 = vmatprep.subr.bf16.mxu0 0
  %878 = vmatpush1.bf16.msra.mxu0 0
  %879 = vmatprep.subr.bf16.mxu0 0
  %880 = vmatpush1.bf16.msra.mxu0 0
  %881 = vmatprep.subr.bf16.mxu0 0
  %882 = vmatpush1.bf16.msra.mxu0 0
  %883 = vmatprep.subr.bf16.mxu0 0
  %884 = vmatpush1.bf16.msra.mxu0 0
  %885 = vmatprep.subr.bf16.mxu0 0
  %886 = vmatpush1.bf16.msra.mxu0 0
  %887 = vmatprep.subr.bf16.mxu0 0
  %888 = vmatpush1.bf16.msra.mxu0 0
  %889 = vmatprep.subr.bf16.mxu0 0
  %890 = vmatpush1.bf16.msra.mxu0 0
  %891 = vmatprep.subr.bf16.mxu0 0
  %892 = vmatpush1.bf16.msra.mxu0 0
  %893 = vmatprep.subr.bf16.mxu0 0
  %894 = vmatpush1.bf16.msra.mxu0 0
  %895 = vmatprep.subr.bf16.mxu0 0
  %896 = vmatpush1.bf16.msra.mxu0 0
  %897 = vmatprep.subr.bf16.mxu0 0
  %898 = vmatpush1.bf16.msra.mxu0 0
  %899 = vmatprep.subr.bf16.mxu0 0
  %900 = vmatpush1.bf16.msra.mxu0 0
  %901 = vmatprep.mubr.bf16.mxu0 0
  %902 = vmatmul.mubr.bf16.gmra.mrb[0].mxu0 %v867
  %v903 = vpop.f32.mrb[0].mxu0
  %v904 = vadd.f32 0.0, %v903
  %v905 = vpop.f32.mrb[0].mxu0
  %v906 = vpop.f32.mrb[0].mxu0
  %v907 = vpop.f32.mrb[0].mxu0
  %908 = vdwg.mxu0
  %v909 = vadd.f32 %v121, %v856
  %v910 = vxor.u32 %v909, 2147483648
  %v911 = vmul.f32 %v910, 1.442695
  %v912 = vpow.pop %v911
  %v913 = vadd.f32 %v912, 1.0
  %v914 = vrcp.pop %v913
  %v915 = vmul.f32 1.0, %v914
  %v916 = vtanh.pop %v909
  %v917 = vmul.f32 %v915, %v782
  %919 = vrot.lane.b32.xlu0 %v916, 64
  %v920 = vpop.permute.xlu0 %919
  %v922 = vmul.f32 %v915, %v920
  %924 = vrot.lane.b32.xlu0 %v922, 32
  %v925 = vpop.permute.xlu0 %924
  %v927 = vadd.f32 %v917, %v925
  %v928 = vtanh.pop %v927
  %930 = vrot.lane.b32.xlu0 %v928, 64
  %v931 = vpop.permute.xlu0 %930
  %v933 = vmul.f32 %v915, %v931
  %v934 = vadd.f32 %v858, %v904
  %v935 = vxor.u32 %v934, 2147483648
  %v936 = vmul.f32 %v935, 1.442695
  %v937 = vpow.pop %v936
  %v938 = vadd.f32 %v937, 1.0
  %v939 = vrcp.pop %v938
  %v940 = vmul.f32 1.0, %v939
  %v941 = vtanh.pop %v934
  %v942 = vmul.f32 %v940, %v807
  %944 = vrot.lane.b32.xlu0 %v941, 64
  %v945 = vpop.permute.xlu0 %944
  %v947 = vmul.f32 %v940, %v945
  %949 = vrot.lane.b32.xlu0 %v947, 32
  %v950 = vpop.permute.xlu0 %949
  %v952 = vadd.f32 %v942, %v950
  %v953 = vtanh.pop %v952
  %955 = vrot.lane.b32.xlu0 %v953, 64
  %v956 = vpop.permute.xlu0 %955
  %v958 = vmul.f32 %v940, %v956
  %v959 = vpack.c.bf16 %v933, %v933
  %961 = vrot.lane.b32.xlu0 %v959, 32
  %v962 = vpop.permute.xlu0 %961
  %v964 = vsel %vm160, %v962, 0
  %966 = vmatprep.subr.bf16.mxu0 %v153
  %967 = vmatpush1.bf16.msra.mxu0 %v152
  %968 = vmatprep.subr.bf16.mxu0 %v155
  %969 = vmatpush1.bf16.msra.mxu0 %v154
  %970 = vmatprep.subr.bf16.mxu0 0
  %971 = vmatpush1.bf16.msra.mxu0 0
  %972 = vmatprep.subr.bf16.mxu0 0
  %973 = vmatpush1.bf16.msra.mxu0 0
  %974 = vmatprep.subr.bf16.mxu0 0
  %975 = vmatpush1.bf16.msra.mxu0 0
  %976 = vmatprep.subr.bf16.mxu0 0
  %977 = vmatpush1.bf16.msra.mxu0 0
  %978 = vmatprep.subr.bf16.mxu0 0
  %979 = vmatpush1.bf16.msra.mxu0 0
  %980 = vmatprep.subr.bf16.mxu0 0
  %981 = vmatpush1.bf16.msra.mxu0 0
  %982 = vmatprep.subr.bf16.mxu0 0
  %983 = vmatpush1.bf16.msra.mxu0 0
  %984 = vmatprep.subr.bf16.mxu0 0
  %985 = vmatpush1.bf16.msra.mxu0 0
  %986 = vmatprep.subr.bf16.mxu0 0
  %987 = vmatpush1.bf16.msra.mxu0 0
  %988 = vmatprep.subr.bf16.mxu0 0
  %989 = vmatpush1.bf16.msra.mxu0 0
  %990 = vmatprep.subr.bf16.mxu0 0
  %991 = vmatpush1.bf16.msra.mxu0 0
  %992 = vmatprep.subr.bf16.mxu0 0
  %993 = vmatpush1.bf16.msra.mxu0 0
  %994 = vmatprep.subr.bf16.mxu0 0
  %995 = vmatpush1.bf16.msra.mxu0 0
  %996 = vmatprep.subr.bf16.mxu0 0
  %997 = vmatpush1.bf16.msra.mxu0 0
  %998 = vmatprep.mubr.bf16.mxu0 0
  %999 = vmatmul.mubr.bf16.gmra.mrb[0].mxu0 %v964
  %v1000 = vpop.f32.mrb[0].mxu0
  %v1001 = vadd.f32 0.0, %v1000
  %v1002 = vpop.f32.mrb[0].mxu0
  %v1003 = vadd.f32 0.0, %v1002
  %v1004 = vpop.f32.mrb[0].mxu0
  %v1005 = vpop.f32.mrb[0].mxu0
  %1006 = vdwg.mxu0
  %v1007 = vpack.c.bf16 %v958, %v958
  %1009 = vrot.lane.b32.xlu0 %v1007, 32
  %v1010 = vpop.permute.xlu0 %1009
  %v1012 = vsel %vm160, %v1010, 0
  %1014 = vmatprep.subr.bf16.mxu0 0
  %1015 = vmatpush1.bf16.msra.mxu0 %v285
  %1016 = vmatprep.subr.bf16.mxu0 0
  %1017 = vmatpush1.bf16.msra.mxu0 %v286
  %1018 = vmatprep.subr.bf16.mxu0 0
  %1019 = vmatpush1.bf16.msra.mxu0 0
  %1020 = vmatprep.subr.bf16.mxu0 0
  %1021 = vmatpush1.bf16.msra.mxu0 0
  %1022 = vmatprep.subr.bf16.mxu0 0
  %1023 = vmatpush1.bf16.msra.mxu0 0
  %1024 = vmatprep.subr.bf16.mxu0 0
  %1025 = vmatpush1.bf16.msra.mxu0 0
  %1026 = vmatprep.subr.bf16.mxu0 0
  %1027 = vmatpush1.bf16.msra.mxu0 0
  %1028 = vmatprep.subr.bf16.mxu0 0
  %1029 = vmatpush1.bf16.msra.mxu0 0
  %1030 = vmatprep.subr.bf16.mxu0 0
  %1031 = vmatpush1.bf16.msra.mxu0 0
  %1032 = vmatprep.subr.bf16.mxu0 0
  %1033 = vmatpush1.bf16.msra.mxu0 0
  %1034 = vmatprep.subr.bf16.mxu0 0
  %1035 = vmatpush1.bf16.msra.mxu0 0
  %1036 = vmatprep.subr.bf16.mxu0 0
  %1037 = vmatpush1.bf16.msra.mxu0 0
  %1038 = vmatprep.subr.bf16.mxu0 0
  %1039 = vmatpush1.bf16.msra.mxu0 0
  %1040 = vmatprep.subr.bf16.mxu0 0
  %1041 = vmatpush1.bf16.msra.mxu0 0
  %1042 = vmatprep.subr.bf16.mxu0 0
  %1043 = vmatpush1.bf16.msra.mxu0 0
  %1044 = vmatprep.subr.bf16.mxu0 0
  %1045 = vmatpush1.bf16.msra.mxu0 0
  %1046 = vmatprep.mubr.bf16.mxu0 0
  %1047 = vmatmul.mubr.bf16.gmra.mrb[0].mxu0 %v1012
  %v1048 = vpop.f32.mrb[0].mxu0
  %v1049 = vadd.f32 0.0, %v1048
  %v1050 = vpop.f32.mrb[0].mxu0
  %v1051 = vpop.f32.mrb[0].mxu0
  %v1052 = vpop.f32.mrb[0].mxu0
  %1053 = vdwg.mxu0
  %v1054 = vadd.f32 %v126, %v1001
  %v1055 = vxor.u32 %v1054, 2147483648
  %v1056 = vmul.f32 %v1055, 1.442695
  %v1057 = vpow.pop %v1056
  %v1058 = vadd.f32 %v1057, 1.0
  %v1059 = vrcp.pop %v1058
  %v1060 = vmul.f32 1.0, %v1059
  %v1061 = vtanh.pop %v1054
  %v1062 = vmul.f32 %v1060, %v927
  %1064 = vrot.lane.b32.xlu0 %v1061, 64
  %v1065 = vpop.permute.xlu0 %1064
  %v1067 = vmul.f32 %v1060, %v1065
  %1069 = vrot.lane.b32.xlu0 %v1067, 32
  %v1070 = vpop.permute.xlu0 %1069
  %v1072 = vadd.f32 %v1062, %v1070
  %v1073 = vtanh.pop %v1072
  %1075 = vrot.lane.b32.xlu0 %v1073, 64
  %v1076 = vpop.permute.xlu0 %1075
  %v1078 = vmul.f32 %v1060, %v1076
  %v1079 = vadd.f32 %v1003, %v1049
  %v1080 = vxor.u32 %v1079, 2147483648
  %v1081 = vmul.f32 %v1080, 1.442695
  %v1082 = vpow.pop %v1081
  %v1083 = vadd.f32 %v1082, 1.0
  %v1084 = vrcp.pop %v1083
  %v1085 = vmul.f32 1.0, %v1084
  %v1086 = vtanh.pop %v1079
  %v1087 = vmul.f32 %v1085, %v952
  %1089 = vrot.lane.b32.xlu0 %v1086, 64
  %v1090 = vpop.permute.xlu0 %1089
  %v1092 = vmul.f32 %v1085, %v1090
  %1094 = vrot.lane.b32.xlu0 %v1092, 32
  %v1095 = vpop.permute.xlu0 %1094
  %v1097 = vadd.f32 %v1087, %v1095
  %v1098 = vtanh.pop %v1097
  %1100 = vrot.lane.b32.xlu0 %v1098, 64
  %v1101 = vpop.permute.xlu0 %1100
  %v1103 = vmul.f32 %v1085, %v1101
  %v1104 = vpack.c.bf16 %v1078, %v1078
  %1106 = vrot.lane.b32.xlu0 %v1104, 32
  %v1107 = vpop.permute.xlu0 %1106
  %v1109 = vsel %vm160, %v1107, 0
  %1111 = vmatprep.subr.bf16.mxu0 %v153
  %1112 = vmatpush1.bf16.msra.mxu0 %v152
  %1113 = vmatprep.subr.bf16.mxu0 %v155
  %1114 = vmatpush1.bf16.msra.mxu0 %v154
  %1115 = vmatprep.subr.bf16.mxu0 0
  %1116 = vmatpush1.bf16.msra.mxu0 0
  %1117 = vmatprep.subr.bf16.mxu0 0
  %1118 = vmatpush1.bf16.msra.mxu0 0
  %1119 = vmatprep.subr.bf16.mxu0 0
  %1120 = vmatpush1.bf16.msra.mxu0 0
  %1121 = vmatprep.subr.bf16.mxu0 0
  %1122 = vmatpush1.bf16.msra.mxu0 0
  %1123 = vmatprep.subr.bf16.mxu0 0
  %1124 = vmatpush1.bf16.msra.mxu0 0
  %1125 = vmatprep.subr.bf16.mxu0 0
  %1126 = vmatpush1.bf16.msra.mxu0 0
  %1127 = vmatprep.subr.bf16.mxu0 0
  %1128 = vmatpush1.bf16.msra.mxu0 0
  %1129 = vmatprep.subr.bf16.mxu0 0
  %1130 = vmatpush1.bf16.msra.mxu0 0
  %1131 = vmatprep.subr.bf16.mxu0 0
  %1132 = vmatpush1.bf16.msra.mxu0 0
  %1133 = vmatprep.subr.bf16.mxu0 0
  %1134 = vmatpush1.bf16.msra.mxu0 0
  %1135 = vmatprep.subr.bf16.mxu0 0
  %1136 = vmatpush1.bf16.msra.mxu0 0
  %1137 = vmatprep.subr.bf16.mxu0 0
  %1138 = vmatpush1.bf16.msra.mxu0 0
  %1139 = vmatprep.subr.bf16.mxu0 0
  %1140 = vmatpush1.bf16.msra.mxu0 0
  %1141 = vmatprep.subr.bf16.mxu0 0
  %1142 = vmatpush1.bf16.msra.mxu0 0
  %1143 = vmatprep.mubr.bf16.mxu0 0
  %1144 = vmatmul.mubr.bf16.gmra.mrb[0].mxu0 %v1109
  %v1145 = vpop.f32.mrb[0].mxu0
  %v1146 = vadd.f32 0.0, %v1145
  %v1147 = vpop.f32.mrb[0].mxu0
  %v1148 = vadd.f32 0.0, %v1147
  %v1149 = vpop.f32.mrb[0].mxu0
  %v1150 = vpop.f32.mrb[0].mxu0
  %1151 = vdwg.mxu0
  %v1152 = vpack.c.bf16 %v1103, %v1103
  %1154 = vrot.lane.b32.xlu0 %v1152, 32
  %v1155 = vpop.permute.xlu0 %1154
  %v1157 = vsel %vm160, %v1155, 0
  %1159 = vmatprep.subr.bf16.mxu0 0
  %1160 = vmatpush1.bf16.msra.mxu0 %v285
  %1161 = vmatprep.subr.bf16.mxu0 0
  %1162 = vmatpush1.bf16.msra.mxu0 %v286
  %1163 = vmatprep.subr.bf16.mxu0 0
  %1164 = vmatpush1.bf16.msra.mxu0 0
  %1165 = vmatprep.subr.bf16.mxu0 0
  %1166 = vmatpush1.bf16.msra.mxu0 0
  %1167 = vmatprep.subr.bf16.mxu0 0
  %1168 = vmatpush1.bf16.msra.mxu0 0
  %1169 = vmatprep.subr.bf16.mxu0 0
  %1170 = vmatpush1.bf16.msra.mxu0 0
  %1171 = vmatprep.subr.bf16.mxu0 0
  %1172 = vmatpush1.bf16.msra.mxu0 0
  %1173 = vmatprep.subr.bf16.mxu0 0
  %1174 = vmatpush1.bf16.msra.mxu0 0
  %1175 = vmatprep.subr.bf16.mxu0 0
  %1176 = vmatpush1.bf16.msra.mxu0 0
  %1177 = vmatprep.subr.bf16.mxu0 0
  %1178 = vmatpush1.bf16.msra.mxu0 0
  %1179 = vmatprep.subr.bf16.mxu0 0
  %1180 = vmatpush1.bf16.msra.mxu0 0
  %1181 = vmatprep.subr.bf16.mxu0 0
  %1182 = vmatpush1.bf16.msra.mxu0 0
  %1183 = vmatprep.subr.bf16.mxu0 0
  %1184 = vmatpush1.bf16.msra.mxu0 0
  %1185 = vmatprep.subr.bf16.mxu0 0
  %1186 = vmatpush1.bf16.msra.mxu0 0
  %1187 = vmatprep.subr.bf16.mxu0 0
  %1188 = vmatpush1.bf16.msra.mxu0 0
  %1189 = vmatprep.subr.bf16.mxu0 0
  %1190 = vmatpush1.bf16.msra.mxu0 0
  %1191 = vmatprep.mubr.bf16.mxu0 0
  %1192 = vmatmul.mubr.bf16.gmra.mrb[0].mxu0 %v1157
  %v1193 = vpop.f32.mrb[0].mxu0
  %v1194 = vadd.f32 0.0, %v1193
  %v1195 = vpop.f32.mrb[0].mxu0
  %v1196 = vpop.f32.mrb[0].mxu0
  %v1197 = vpop.f32.mrb[0].mxu0
  %1198 = vdwg.mxu0
  %v1199 = vadd.f32 %v129, %v1146
  %v1200 = vxor.u32 %v1199, 2147483648
  %v1201 = vmul.f32 %v1200, 1.442695
  %v1202 = vpow.pop %v1201
  %v1203 = vadd.f32 %v1202, 1.0
  %v1204 = vrcp.pop %v1203
  %v1205 = vmul.f32 1.0, %v1204
  %v1206 = vtanh.pop %v1199
  %v1207 = vmul.f32 %v1205, %v1072
  %1209 = vrot.lane.b32.xlu0 %v1206, 64
  %v1210 = vpop.permute.xlu0 %1209
  %v1212 = vmul.f32 %v1205, %v1210
  %1214 = vrot.lane.b32.xlu0 %v1212, 32
  %v1215 = vpop.permute.xlu0 %1214
  %v1217 = vadd.f32 %v1207, %v1215
  %v1218 = vtanh.pop %v1217
  %1220 = vrot.lane.b32.xlu0 %v1218, 64
  %v1221 = vpop.permute.xlu0 %1220
  %v1223 = vmul.f32 %v1205, %v1221
  %v1224 = vadd.f32 %v1148, %v1194
  %v1225 = vxor.u32 %v1224, 2147483648
  %v1226 = vmul.f32 %v1225, 1.442695
  %v1227 = vpow.pop %v1226
  %v1228 = vadd.f32 %v1227, 1.0
  %v1229 = vrcp.pop %v1228
  %v1230 = vmul.f32 1.0, %v1229
  %v1231 = vtanh.pop %v1224
  %v1232 = vmul.f32 %v1230, %v1097
  %1234 = vrot.lane.b32.xlu0 %v1231, 64
  %v1235 = vpop.permute.xlu0 %1234
  %v1237 = vmul.f32 %v1230, %v1235
  %1239 = vrot.lane.b32.xlu0 %v1237, 32
  %v1240 = vpop.permute.xlu0 %1239
  %v1242 = vadd.f32 %v1232, %v1240
  %v1243 = vtanh.pop %v1242
  %1245 = vrot.lane.b32.xlu0 %v1243, 64
  %v1246 = vpop.permute.xlu0 %1245
  %v1248 = vmul.f32 %v1230, %v1246
  %v1249 = vpack.c.bf16 %v1223, %v1223
  %1251 = vrot.lane.b32.xlu0 %v1249, 32
  %v1252 = vpop.permute.xlu0 %1251
  %v1254 = vsel %vm160, %v1252, 0
  %1256 = vmatprep.subr.bf16.mxu0 %v153
  %1257 = vmatpush1.bf16.msra.mxu0 %v152
  %1258 = vmatprep.subr.bf16.mxu0 %v155
  %1259 = vmatpush1.bf16.msra.mxu0 %v154
  %1260 = vmatprep.subr.bf16.mxu0 0
  %1261 = vmatpush1.bf16.msra.mxu0 0
  %1262 = vmatprep.subr.bf16.mxu0 0
  %1263 = vmatpush1.bf16.msra.mxu0 0
  %1264 = vmatprep.subr.bf16.mxu0 0
  %1265 = vmatpush1.bf16.msra.mxu0 0
  %1266 = vmatprep.subr.bf16.mxu0 0
  %1267 = vmatpush1.bf16.msra.mxu0 0
  %1268 = vmatprep.subr.bf16.mxu0 0
  %1269 = vmatpush1.bf16.msra.mxu0 0
  %1270 = vmatprep.subr.bf16.mxu0 0
  %1271 = vmatpush1.bf16.msra.mxu0 0
  %1272 = vmatprep.subr.bf16.mxu0 0
  %1273 = vmatpush1.bf16.msra.mxu0 0
  %1274 = vmatprep.subr.bf16.mxu0 0
  %1275 = vmatpush1.bf16.msra.mxu0 0
  %1276 = vmatprep.subr.bf16.mxu0 0
  %1277 = vmatpush1.bf16.msra.mxu0 0
  %1278 = vmatprep.subr.bf16.mxu0 0
  %1279 = vmatpush1.bf16.msra.mxu0 0
  %1280 = vmatprep.subr.bf16.mxu0 0
  %1281 = vmatpush1.bf16.msra.mxu0 0
  %1282 = vmatprep.subr.bf16.mxu0 0
  %1283 = vmatpush1.bf16.msra.mxu0 0
  %1284 = vmatprep.subr.bf16.mxu0 0
  %1285 = vmatpush1.bf16.msra.mxu0 0
  %1286 = vmatprep.subr.bf16.mxu0 0
  %1287 = vmatpush1.bf16.msra.mxu0 0
  %1288 = vmatprep.mubr.bf16.mxu0 0
  %1289 = vmatmul.mubr.bf16.gmra.mrb[0].mxu0 %v1254
  %v1290 = vpop.f32.mrb[0].mxu0
  %v1291 = vpop.f32.mrb[0].mxu0
  %v1292 = vadd.f32 0.0, %v1291
  %v1293 = vpop.f32.mrb[0].mxu0
  %v1294 = vpop.f32.mrb[0].mxu0
  %1295 = vdwg.mxu0
  %v1296 = vpack.c.bf16 %v1248, %v1248
  %1298 = vrot.lane.b32.xlu0 %v1296, 32
  %v1299 = vpop.permute.xlu0 %1298
  %v1301 = vsel %vm160, %v1299, 0
  %1303 = vmatprep.subr.bf16.mxu0 0
  %1304 = vmatpush1.bf16.msra.mxu0 %v285
  %1305 = vmatprep.subr.bf16.mxu0 0
  %1306 = vmatpush1.bf16.msra.mxu0 %v286
  %1307 = vmatprep.subr.bf16.mxu0 0
  %1308 = vmatpush1.bf16.msra.mxu0 0
  %1309 = vmatprep.subr.bf16.mxu0 0
  %1310 = vmatpush1.bf16.msra.mxu0 0
  %1311 = vmatprep.subr.bf16.mxu0 0
  %1312 = vmatpush1.bf16.msra.mxu0 0
  %1313 = vmatprep.subr.bf16.mxu0 0
  %1314 = vmatpush1.bf16.msra.mxu0 0
  %1315 = vmatprep.subr.bf16.mxu0 0
  %1316 = vmatpush1.bf16.msra.mxu0 0
  %1317 = vmatprep.subr.bf16.mxu0 0
  %1318 = vmatpush1.bf16.msra.mxu0 0
  %1319 = vmatprep.subr.bf16.mxu0 0
  %1320 = vmatpush1.bf16.msra.mxu0 0
  %1321 = vmatprep.subr.bf16.mxu0 0
  %1322 = vmatpush1.bf16.msra.mxu0 0
  %1323 = vmatprep.subr.bf16.mxu0 0
  %1324 = vmatpush1.bf16.msra.mxu0 0
  %1325 = vmatprep.subr.bf16.mxu0 0
  %1326 = vmatpush1.bf16.msra.mxu0 0
  %1327 = vmatprep.subr.bf16.mxu0 0
  %1328 = vmatpush1.bf16.msra.mxu0 0
  %1329 = vmatprep.subr.bf16.mxu0 0
  %1330 = vmatpush1.bf16.msra.mxu0 0
  %1331 = vmatprep.subr.bf16.mxu0 0
  %1332 = vmatpush1.bf16.msra.mxu0 0
  %1333 = vmatprep.subr.bf16.mxu0 0
  %1334 = vmatpush1.bf16.msra.mxu0 0
  %1335 = vmatprep.mubr.bf16.mxu0 0
  %1336 = vmatmul.mubr.bf16.gmra.mrb[0].mxu0 %v1301
  %v1337 = vpop.f32.mrb[0].mxu0
  %v1338 = vadd.f32 0.0, %v1337
  %v1339 = vpop.f32.mrb[0].mxu0
  %v1340 = vpop.f32.mrb[0].mxu0
  %v1341 = vpop.f32.mrb[0].mxu0
  %1342 = vdwg.mxu0
  %v1343 = vadd.f32 %v1292, %v1338
  %v1344 = vxor.u32 %v1343, 2147483648
  %v1345 = vmul.f32 %v1344, 1.442695
  %v1346 = vpow.pop %v1345
  %v1347 = vadd.f32 %v1346, 1.0
  %v1348 = vrcp.pop %v1347
  %v1349 = vmul.f32 1.0, %v1348
  %v1350 = vtanh.pop %v1343
  %v1351 = vmul.f32 %v1349, %v1242
  %1353 = vrot.lane.b32.xlu0 %v1350, 64
  %v1354 = vpop.permute.xlu0 %1353
  %v1356 = vmul.f32 %v1349, %v1354
  %1358 = vrot.lane.b32.xlu0 %v1356, 32
  %v1359 = vpop.permute.xlu0 %1358
  %v1361 = vadd.f32 %v1351, %v1359
  %v1362 = vtanh.pop %v1361
  %1364 = vrot.lane.b32.xlu0 %v1362, 64
  %v1365 = vpop.permute.xlu0 %1364
  %v1367 = vmul.f32 %v1349, %v1365
  %v1368 = vpack.c.bf16 %v1367, %v1367
  %v1369 = vld [vmem:[%s4] sm:$0xf]
  %v1370 = vld [vmem:[%s4 + $0x4] sm:$0xf]
  %v1371 = vld [vmem:[%s4 + $0x8] sm:$0xf]
  %v1372 = vld [vmem:[%s4 + $0xc] sm:$0xf]
  %1374 = vrot.lane.b32.xlu0 %v1368, 32
  %v1375 = vpop.permute.xlu0 %1374
  %v1380 = vunpack.c.l.b16 %v1369
  %v1381 = vunpack.c.l.b16 %v1370
  %v1382 = vunpack.c.l.b16 %v1371
  %v1383 = vunpack.c.l.b16 %v1372
  %v1384 = vpack.c.b16 %v1381, %v1380
  %v1385 = vpack.c.b16 %v1383, %v1382
  %v1389 = vsel %vm160, %v1375, 0
  %1391 = vmatprep.subr.bf16.mxu0 0
  %1392 = vmatpush1.bf16.msra.mxu0 %v1384
  %1393 = vmatprep.subr.bf16.mxu0 0
  %1394 = vmatpush1.bf16.msra.mxu0 %v1385
  %1395 = vmatprep.subr.bf16.mxu0 0
  %1396 = vmatpush1.bf16.msra.mxu0 0
  %1397 = vmatprep.subr.bf16.mxu0 0
  %1398 = vmatpush1.bf16.msra.mxu0 0
  %1399 = vmatprep.subr.bf16.mxu0 0
  %1400 = vmatpush1.bf16.msra.mxu0 0
  %1401 = vmatprep.subr.bf16.mxu0 0
  %1402 = vmatpush1.bf16.msra.mxu0 0
  %1403 = vmatprep.subr.bf16.mxu0 0
  %1404 = vmatpush1.bf16.msra.mxu0 0
  %1405 = vmatprep.subr.bf16.mxu0 0
  %1406 = vmatpush1.bf16.msra.mxu0 0
  %1407 = vmatprep.subr.bf16.mxu0 0
  %1408 = vmatpush1.bf16.msra.mxu0 0
  %1409 = vmatprep.subr.bf16.mxu0 0
  %1410 = vmatpush1.bf16.msra.mxu0 0
  %1411 = vmatprep.subr.bf16.mxu0 0
  %1412 = vmatpush1.bf16.msra.mxu0 0
  %1413 = vmatprep.subr.bf16.mxu0 0
  %1414 = vmatpush1.bf16.msra.mxu0 0
  %1415 = vmatprep.subr.bf16.mxu0 0
  %1416 = vmatpush1.bf16.msra.mxu0 0
  %1417 = vmatprep.subr.bf16.mxu0 0
  %1418 = vmatpush1.bf16.msra.mxu0 0
  %1419 = vmatprep.subr.bf16.mxu0 0
  %1420 = vmatpush1.bf16.msra.mxu0 0
  %1421 = vmatprep.subr.bf16.mxu0 0
  %1422 = vmatpush1.bf16.msra.mxu0 0
  %1423 = vmatprep.mubr.bf16.mxu0 0
  %1424 = vmatmul.mubr.bf16.gmra.mrb[0].mxu0 %v1389
  %v1425 = vpop.f32.mrb[0].mxu0
  %v1426 = vadd.f32 0.0, %v1425
  %v1427 = vpop.f32.mrb[0].mxu0
  %v1428 = vpop.f32.mrb[0].mxu0
  %v1429 = vpop.f32.mrb[0].mxu0
  %1430 = vdwg.mxu0
  %vm1431 = vcmask 15360
  %1432 = vst.msk [vmem:[%s5] sm:$0xff] %vm1431, %v1426
  // Predicated region
  $region22: #{tpu_custom_call.1} parent=0 // pred_check
    _
  $region23: #{tpu_custom_call.1} parent=0 // pred_check_branch
    %1434 = sbr.rel (0) target = $region25
  $region24: #{tpu_custom_call.1} parent=0 // pred_region
    _
  $region25: #{tpu_custom_call.1} parent=0 // pred_fallthru
    _
  // Predicated region
  $region26: #{tpu_custom_call.1} parent=0 // pred_check
    _
  $region27: #{tpu_custom_call.1} parent=0 // pred_check_branch
    %1436 = sbr.rel (0) target = $region29
  $region28: #{tpu_custom_call.1} parent=0 // pred_region
    _
  $region29: #{tpu_custom_call.1} parent=0 // pred_fallthru
    _

</llo_original>
